<compile_context>
chip_gen: v6e
topology: v6e:2x2x1
jax: 0.10.0
libtpu: 0.0.40
codegen_flags: <defaults>
</compile_context>

<pallas_src>
import jax
import jax.numpy as jnp
from jax.experimental import pallas as pl
from jax.experimental.pallas import tpu as pltpu

EPS = 1e-3


def conv1x1_bn_kernel(w_ref, x_ref, gb_ref, o_ref):
    # w_ref:  (BLK, Cin)    1x1 conv weight rows for this Cout block
    # x_ref:  (Cin, M)      flattened input pixels (channels on sublanes, pixels on lanes)
    # gb_ref: (BLK, 2)      [:, 0] = gamma, [:, 1] = beta for this Cout block
    # o_ref:  (BLK, M)
    y = jnp.dot(w_ref[...], x_ref[...], preferred_element_type=jnp.float32)  # MXU

    m = y.shape[1]
    inv_m = 1.0 / m

    # Single-pass biased (training-mode) batch statistics over the pixel axis per channel.
    # Each Cout block owns the full pixel axis, so stats are exact per channel.
    sum_y = jnp.sum(y, axis=1, keepdims=True)        # (BLK, 1)  XLU lane reduce
    sum_yy = jnp.sum(y * y, axis=1, keepdims=True)   # (BLK, 1)
    mean = sum_y * inv_m
    var = jnp.maximum(sum_yy * inv_m - mean * mean, 0.0)
    inv_std = jax.lax.rsqrt(var + EPS)               # EUP (free slot)

    # Fold BN affine into one scale/shift FMA over the (BLK, M) slab.
    gamma = gb_ref[:, 0:1]                           # (BLK, 1)
    beta = gb_ref[:, 1:2]                            # (BLK, 1)
    scale = gamma * inv_std
    shift = beta - mean * scale
    o_ref[...] = (y * scale + shift).astype(o_ref.dtype)


def _pick_cout_blocks(cout):
    # 2-4 blocks: enough to pipeline input-load / output-writeback against compute
    # without eating the gain in per-step overhead on a ~1-2 us kernel.
    for nb in (4, 2):
        blk = cout // nb
        if cout % nb == 0 and blk % 8 == 0:
            return nb, blk
    return 1, cout


def conv1x1_bn(x_nchw, weight, gamma, beta):
    """x_nchw: (N, Cin, H, W); weight: (Cout, Cin, 1, 1); gamma/beta: (Cout,)."""
    n, cin, h, w = x_nchw.shape
    cout = weight.shape[0]
    m = n * h * w

    # NCHW -> (Cin, M). For N == 1 (the module's shape) this is a pure reshape: no transpose,
    # no extra HBM round trip.
    if n == 1:
        x_cm = x_nchw.reshape(cin, m)
    else:
        x_cm = jnp.transpose(x_nchw.reshape(n, cin, h * w), (1, 0, 2)).reshape(cin, m)

    w_mat = weight.reshape(cout, cin)                # (Cout, Cin)
    gb = jnp.stack([gamma, beta], axis=1)            # (Cout, 2)

    n_blocks, blk = _pick_cout_blocks(cout)

    cost = pl.CostEstimate(
        flops=2 * m * cin * cout,
        transcendentals=cout,
        bytes_accessed=4 * (cin * m + cout * cin + 2 * cout + cout * m),
    )

    out_cm = pl.pallas_call(
        conv1x1_bn_kernel,
        out_shape=jax.ShapeDtypeStruct((cout, m), x_nchw.dtype),
        grid=(n_blocks,),
        in_specs=[
            pl.BlockSpec((blk, cin), lambda i: (i, 0)),   # W rows follow the grid
            pl.BlockSpec((cin, m), lambda i: (0, 0)),     # X stays resident, DMA'd once
            pl.BlockSpec((blk, 2), lambda i: (i, 0)),     # gamma/beta follow the grid
        ],
        out_specs=pl.BlockSpec((blk, m), lambda i: (i, 0)),
        compiler_params=pltpu.CompilerParams(
            dimension_semantics=("parallel",),            # shard blocks across TCs on v7x
        ),
        cost_estimate=cost,
    )(w_mat, x_cm, gb)

    # (Cout, M) -> NCHW. For N == 1 this is again a pure reshape.
    if n == 1:
        return out_cm.reshape(1, cout, h, w)
    return jnp.transpose(out_cm.reshape(cout, n, h, w), (1, 0, 2, 3))


def reference(x_nchw, weight, gamma, beta):
    n, cin, h, w = x_nchw.shape
    cout = weight.shape[0]
    x_flat = jnp.transpose(x_nchw, (0, 2, 3, 1)).reshape(-1, cin)
    y = x_flat @ jnp.transpose(weight.reshape(cout, cin), (1, 0))
    mean = jnp.mean(y, axis=0, keepdims=True)
    var = jnp.mean((y - mean) ** 2, axis=0, keepdims=True)
    y = (y - mean) / jnp.sqrt(var + EPS) * gamma.reshape(1, -1) + beta.reshape(1, -1)
    return jnp.transpose(y.reshape(n, h, w, cout), (0, 3, 1, 2))


if __name__ == "__main__":
    key = jax.random.PRNGKey(0)
    k_x, k_w, k_g, k_b = jax.random.split(key, 4)

    N, CIN, H, W, COUT = 1, 160, 14, 14, 960

    x = jax.random.normal(k_x, (N, CIN, H, W), dtype=jnp.float32)
    # Conv2d weight (Cout, Cin, 1, 1); deterministic init
    weight = jax.random.normal(k_w, (COUT, CIN, 1, 1), dtype=jnp.float32) * 0.05
    # BatchNorm affine params (perturbed around PyTorch defaults of 1 / 0)
    gamma = 1.0 + 0.1 * jax.random.normal(k_g, (COUT,), dtype=jnp.float32)
    beta = 0.1 * jax.random.normal(k_b, (COUT,), dtype=jnp.float32)

    out = conv1x1_bn(x, weight, gamma, beta)
    out = jax.block_until_ready(out)

    ref = reference(x, weight, gamma, beta)
    assert out.shape == (N, COUT, H, W)
    assert jnp.allclose(out, ref, atol=1e-4, rtol=1e-4), "mismatch vs reference"

    print("KERNEL_OK")
</pallas_src>

<mosaic_0001>
module attributes {stable_mosaic.version = 11 : i64} {
  func.func @conv1x1_bn_kernel(%arg0: i32, %arg1: memref<240x160xf32, #tpu.memory_space<vmem>>, %arg2: memref<160x196xf32, #tpu.memory_space<vmem>>, %arg3: memref<240x2xf32, #tpu.memory_space<vmem>>, %arg4: memref<240x196xf32, #tpu.memory_space<vmem>>) attributes {dimension_semantics = [#tpu.dimension_semantics<parallel>], iteration_bounds = array<i64: 4>, scalar_prefetch = 0 : i64, scratch_operands = 0 : i64, tpu.core_type = #tpu.core_type<tc>, window_params = [{transform_indices = @transform_0, window_bounds = array<i64: 240, 160>}, {pipeline_mode = #tpu.pipeline_mode<synchronous>, transform_indices = @transform_1, window_bounds = array<i64: 160, 196>}, {transform_indices = @transform_2, window_bounds = array<i64: 240, 2>}, {transform_indices = @transform_3, window_bounds = array<i64: 240, 196>}]} {
    %c0 = arith.constant 0 : index
    %c0_0 = arith.constant 0 : index
    %0 = vector.load %arg1[%c0, %c0_0] : memref<240x160xf32, #tpu.memory_space<vmem>>, vector<240x160xf32>
    %c0_1 = arith.constant 0 : index
    %c0_2 = arith.constant 0 : index
    %1 = vector.load %arg2[%c0_1, %c0_2] : memref<160x196xf32, #tpu.memory_space<vmem>>, vector<160x196xf32>
    %cst = arith.constant dense<0.000000e+00> : vector<240x196xf32>
    %2 = tpu.matmul %0, %1, %cst {dimension_numbers = #tpu.dot_dimension_numbers<[1], [0], [0], [1], [0, 0, 1, 1], [], []>} : vector<240x160xf32>, vector<160x196xf32>, vector<240x196xf32> -> vector<240x196xf32>
    %cst_3 = arith.constant dense<0.000000e+00> : vector<240xf32>
    %3 = vector.multi_reduction <add>, %2, %cst_3 [1] : vector<240x196xf32> to vector<240xf32>
    %4 = vector.shape_cast %3 : vector<240xf32> to vector<240x1xf32>
    %5 = arith.mulf %2, %2 : vector<240x196xf32>
    %cst_4 = arith.constant dense<0.000000e+00> : vector<240xf32>
    %6 = vector.multi_reduction <add>, %5, %cst_4 [1] : vector<240x196xf32> to vector<240xf32>
    %7 = vector.shape_cast %6 : vector<240xf32> to vector<240x1xf32>
    %cst_5 = arith.constant 0.00510204071 : f32
    %8 = vector.broadcast %cst_5 : f32 to vector<240x1xf32>
    %9 = arith.mulf %4, %8 : vector<240x1xf32>
    %cst_6 = arith.constant 0.00510204071 : f32
    %10 = vector.broadcast %cst_6 : f32 to vector<240x1xf32>
    %11 = arith.mulf %7, %10 : vector<240x1xf32>
    %12 = arith.mulf %9, %9 : vector<240x1xf32>
    %13 = arith.subf %11, %12 : vector<240x1xf32>
    %cst_7 = arith.constant 0.000000e+00 : f32
    %14 = vector.broadcast %cst_7 : f32 to vector<240x1xf32>
    %15 = arith.maximumf %13, %14 : vector<240x1xf32>
    %cst_8 = arith.constant 1.000000e-03 : f32
    %16 = vector.broadcast %cst_8 : f32 to vector<240x1xf32>
    %17 = arith.addf %15, %16 : vector<240x1xf32>
    %18 = math.rsqrt %17 : vector<240x1xf32>
    %c0_9 = arith.constant 0 : index
    %c0_10 = arith.constant 0 : index
    %19 = vector.load %arg3[%c0_9, %c0_10] : memref<240x2xf32, #tpu.memory_space<vmem>>, vector<240x1xf32>
    %c0_11 = arith.constant 0 : index
    %c1 = arith.constant 1 : index
    %20 = vector.load %arg3[%c0_11, %c1] : memref<240x2xf32, #tpu.memory_space<vmem>>, vector<240x1xf32>
    %21 = arith.mulf %19, %18 : vector<240x1xf32>
    %22 = arith.mulf %9, %21 : vector<240x1xf32>
    %23 = arith.subf %20, %22 : vector<240x1xf32>
    %24 = vector.broadcast %21 : vector<240x1xf32> to vector<240x196xf32>
    %25 = arith.mulf %2, %24 : vector<240x196xf32>
    %26 = vector.broadcast %23 : vector<240x1xf32> to vector<240x196xf32>
    %27 = arith.addf %25, %26 : vector<240x196xf32>
    %c0_12 = arith.constant 0 : index
    %c0_13 = arith.constant 0 : index
    %28 = vector.load %arg4[%c0_12, %c0_13] : memref<240x196xf32, #tpu.memory_space<vmem>>, vector<240x196xf32>
    tpu.vector_store %arg4[%c0_12, %c0_13], %27 {strides = array<i32>} : memref<240x196xf32, #tpu.memory_space<vmem>>, vector<240x196xf32>,
    return
  }
  func.func @transform_0(%arg0: i32) -> (i32, i32) {
    %c0_i32 = arith.constant 0 : i32
    %c0_i32_0 = arith.constant 0 : i32
    return %arg0, %c0_i32 : i32, i32
  }
  func.func @transform_1(%arg0: i32) -> (i32, i32) {
    %c0_i32 = arith.constant 0 : i32
    %c0_i32_0 = arith.constant 0 : i32
    %c0_i32_1 = arith.constant 0 : i32
    return %c0_i32, %c0_i32_0 : i32, i32
  }
  func.func @transform_2(%arg0: i32) -> (i32, i32) {
    %c0_i32 = arith.constant 0 : i32
    %c0_i32_0 = arith.constant 0 : i32
    return %arg0, %c0_i32 : i32, i32
  }
  func.func @transform_3(%arg0: i32) -> (i32, i32) {
    %c0_i32 = arith.constant 0 : i32
    %c0_i32_0 = arith.constant 0 : i32
    return %arg0, %c0_i32 : i32, i32
  }
}

</mosaic_0001>

<llo_original>
// kernel: tpu_custom_call.1
$region0: #{tpu_custom_call.1}
  #allocation0 [shape = 'u32[]', space=smem, size = 0x4, offset = 0x4, fixed_abs, tag = 'smem constant byte address 0x4 - core index']
  #allocation1 [shape = 'u32[144,128]{1,0:T(1,128)}', space=vmem, size = 0x12000, scoped, tag = 'internal scratch']
  %s0 = inlined_call_operand.vmem [shape: f32[960,160], index: 0, kind: input, shape index: {}]
  %s1 = inlined_call_operand.vmem [shape: f32[160,196], index: 1, kind: input, shape index: {}]
  %s2 = inlined_call_operand.vmem [shape: f32[960,2], index: 2, kind: input, shape index: {}]
  %s3 = inlined_call_operand.vmem [shape: f32[960,196], index: 3, kind: output, shape index: {}]
  %s4 = sld [smem:[#allocation0]]
  $region45: #{tpu_custom_call.1} parent=0
    _
  %s6 = ssub.s32 1, %s4
  %s7 = scalar_select 0, %s6, %s4
  loop: start=0, step=1, limit=6
  $region2: #{tpu_custom_call.1} parent=0 // loop_pre_header
    _
  $region3: #{tpu_custom_call.1} parent=0 // loop_header
    %s9 = sphi 0, %s13
    %p10 = scmp.ge.s32.totalorder %s9, 6
    %s19 = sphi 0, %s21
    %s22 = sphi 0, %s19
    %s23 = sphi 0, %s22
    %s39 = sphi 0, %s23
    %s43 = sphi 0, %s43
    %s45 = sphi 0, %s43
    %s46 = sphi 0, %s45
    %s60 = sphi 0, %s46
    %s66 = sphi 0, %s68
    %s69 = sphi 0, %s66
    %s70 = sphi 0, %s69
    %s86 = sphi 0, %s70
    %s92 = sphi 0, %s94
    %s95 = sphi 0, %s92
    %s96 = sphi 0, %s95
    %s112 = sphi 0, %s96
  $region4: #{tpu_custom_call.1} parent=0 // loop_header_branch
    %12 = sbr.rel (%p10) target = $region8
  $region5: #{tpu_custom_call.1} parent=0 // loop_body
    %s14 = ssub.s32 %s9, 1
    %s15 = ssub.s32 %s9, 2
    %s16 = sadd.s32 %s9, 1
    %s17 = ssub.s32 %s9, %s16
    %p18 = scmp.eq.s32.totalorder %s17, 0
    %s20 = sadd.s32 %s19, 1
    %s21 = scalar_select %p18, %s19, %s20
    %p24 = pneg %p18
    %p25 = scmp.eq.s32.totalorder %s9, 3
    %p26 = por %p24, %p25
    %p27 = scmp.ne.s32.totalorder %s19, %s22
    %p28 = scmp.eq.s32.totalorder %s9, 0
    %p29 = por %p27, %p28
    %p30 = scmp.ne.s32.totalorder %s19, %s22
    %p31 = scmp.eq.s32.totalorder %s14, 3
    %p32 = por %p30, %p31
    %p33 = scmp.ne.s32.totalorder %s22, %s23
    %p34 = scmp.eq.s32.totalorder %s14, 0
    %p35 = por %p33, %p34
    %p36 = scmp.ne.s32.totalorder %s22, %s23
    %p37 = scmp.eq.s32.totalorder %s15, 3
    %p38 = por %p36, %p37
    %p40 = scmp.ne.s32.totalorder %s23, %s39
    %p41 = scmp.eq.s32.totalorder %s15, 0
    %p42 = por %p40, %p41
    %s44 = sadd.s32 %s43, 1
    %p47 = scmp.eq.s32.totalorder %s9, 3
    %p48 = scmp.ne.s32.totalorder %s43, %s45
    %p49 = scmp.eq.s32.totalorder %s9, 0
    %p50 = por %p48, %p49
    %p51 = scmp.ne.s32.totalorder %s43, %s45
    %p52 = scmp.eq.s32.totalorder %s14, 3
    %p53 = por %p51, %p52
    %p54 = scmp.ne.s32.totalorder %s45, %s46
    %p55 = scmp.eq.s32.totalorder %s14, 0
    %p56 = por %p54, %p55
    %p57 = scmp.ne.s32.totalorder %s45, %s46
    %p58 = scmp.eq.s32.totalorder %s15, 3
    %p59 = por %p57, %p58
    %p61 = scmp.ne.s32.totalorder %s46, %s60
    %p62 = scmp.eq.s32.totalorder %s15, 0
    %p63 = por %p61, %p62
    %s64 = ssub.s32 %s9, %s16
    %p65 = scmp.eq.s32.totalorder %s64, 0
    %s67 = sadd.s32 %s66, 1
    %s68 = scalar_select %p65, %s66, %s67
    %p71 = pneg %p65
    %p72 = scmp.eq.s32.totalorder %s9, 3
    %p73 = por %p71, %p72
    %p74 = scmp.ne.s32.totalorder %s66, %s69
    %p75 = scmp.eq.s32.totalorder %s9, 0
    %p76 = por %p74, %p75
    %p77 = scmp.ne.s32.totalorder %s66, %s69
    %p78 = scmp.eq.s32.totalorder %s14, 3
    %p79 = por %p77, %p78
    %p80 = scmp.ne.s32.totalorder %s69, %s70
    %p81 = scmp.eq.s32.totalorder %s14, 0
    %p82 = por %p80, %p81
    %p83 = scmp.ne.s32.totalorder %s69, %s70
    %p84 = scmp.eq.s32.totalorder %s15, 3
    %p85 = por %p83, %p84
    %p87 = scmp.ne.s32.totalorder %s70, %s86
    %p88 = scmp.eq.s32.totalorder %s15, 0
    %p89 = por %p87, %p88
    %s90 = ssub.s32 %s9, %s16
    %p91 = scmp.eq.s32.totalorder %s90, 0
    %s93 = sadd.s32 %s92, 1
    %s94 = scalar_select %p91, %s92, %s93
    %p97 = pneg %p91
    %p98 = scmp.eq.s32.totalorder %s9, 3
    %p99 = por %p97, %p98
    %p100 = scmp.ne.s32.totalorder %s92, %s95
    %p101 = scmp.eq.s32.totalorder %s9, 0
    %p102 = por %p100, %p101
    %p103 = scmp.ne.s32.totalorder %s92, %s95
    %p104 = scmp.eq.s32.totalorder %s14, 3
    %p105 = por %p103, %p104
    %p106 = scmp.ne.s32.totalorder %s95, %s96
    %p107 = scmp.eq.s32.totalorder %s14, 0
    %p108 = por %p106, %p107
    %p109 = scmp.ne.s32.totalorder %s95, %s96
    %p110 = scmp.eq.s32.totalorder %s15, 3
    %p111 = por %p109, %p110
    %p113 = scmp.ne.s32.totalorder %s96, %s112
    %p114 = scmp.eq.s32.totalorder %s15, 0
    %p115 = por %p113, %p114
    %p116 = scmp.le.s32.totalorder 1, %s9
    %p117 = scmp.lt.s32.totalorder %s9, 5
    %p118 = pnand %p116, %p117
    %p119 = pneg %p118
    // Predicated region
    $region9: #{tpu_custom_call.1} parent=5 // pred_check
      _
    $region10: #{tpu_custom_call.1} parent=5 // pred_check_branch
      %121 = sbr.rel (%p118) target = $region12
    $region11: #{tpu_custom_call.1} parent=5 // pred_region
      %s122 = ssub.s32 %s9, 1
      // Predicated region
      $region13: #{tpu_custom_call.1} parent=11 // pred_check
        %p123 = pneg %p56
      $region14: #{tpu_custom_call.1} parent=11 // pred_check_branch
        %125 = sbr.rel (%p123) target = $region16
      $region15: #{tpu_custom_call.1} parent=11 // pred_region
        _
      $region16: #{tpu_custom_call.1} parent=11 // pred_fallthru
        _
    $region12: #{tpu_custom_call.1} parent=5 // pred_fallthru
      _
    %p126 = scmp.lt.s32.totalorder %s9, 4
    // Predicated region
    $region17: #{tpu_custom_call.1} parent=5 // pred_check
      %p127 = pneg %p126
    $region18: #{tpu_custom_call.1} parent=5 // pred_check_branch
      %129 = sbr.rel (%p127) target = $region20
    $region19: #{tpu_custom_call.1} parent=5 // pred_region
      // Predicated region
      $region21: #{tpu_custom_call.1} parent=19 // pred_check
        %p130 = pneg %p29
      $region22: #{tpu_custom_call.1} parent=19 // pred_check_branch
        %132 = sbr.rel (%p130) target = $region24
      $region23: #{tpu_custom_call.1} parent=19 // pred_region
        %s133 = smul.u32 30, %s9
        %p134 = scmp.lt.s32.totalorder %s133, 119
        %s135 = scalar_select %p134, %s133, 119
        %s136 = smul.addr %s135, 2
        %s137 = smul.addr %s136, 8
        %s138 = scalar_lea.vmem %s0, %s137
        %s139 = smul.u32 30, %s9
      $region24: #{tpu_custom_call.1} parent=19 // pred_fallthru
        _
      // Predicated region
      $region25: #{tpu_custom_call.1} parent=19 // pred_check
        %p140 = pneg %p76
      $region26: #{tpu_custom_call.1} parent=19 // pred_check_branch
        %142 = sbr.rel (%p140) target = $region28
      $region27: #{tpu_custom_call.1} parent=19 // pred_region
        %s143 = smul.u32 30, %s9
        %p144 = scmp.lt.s32.totalorder %s143, 119
        %s145 = scalar_select %p144, %s143, 119
        %s146 = smul.addr %s145, 8
        %s147 = scalar_lea.vmem %s2, %s146
        %s148 = smul.u32 30, %s9
      $region28: #{tpu_custom_call.1} parent=19 // pred_fallthru
        _
    $region20: #{tpu_custom_call.1} parent=5 // pred_fallthru
      _
    %p149 = scmp.le.s32.totalorder 1, %s9
    %p150 = scmp.lt.s32.totalorder %s9, 5
    %p151 = pnand %p149, %p150
    %p152 = pneg %p151
    // Predicated region
    $region29: #{tpu_custom_call.1} parent=5 // pred_check
      _
    $region30: #{tpu_custom_call.1} parent=5 // pred_check_branch
      %154 = sbr.rel (%p151) target = $region32
    $region31: #{tpu_custom_call.1} parent=5 // pred_region
      %s155 = ssub.s32 %s9, 1
      %s156 = smul.u32 30, %s14
      %p157 = scmp.lt.s32.totalorder %s156, 119
      %s158 = scalar_select %p157, %s156, 119
      %s159 = smul.addr %s158, 2
      %s160 = smul.addr %s159, 8
      %s161 = scalar_lea.vmem %s0, %s160
      %p162 = pneg %p35
      %p163 = pneg %p32
      %p164 = pneg %p56
      %p165 = pneg %p53
      %s166 = smul.u32 30, %s14
      %p167 = scmp.lt.s32.totalorder %s166, 119
      %s168 = scalar_select %p167, %s166, 119
      %s169 = smul.addr %s168, 8
      %s170 = scalar_lea.vmem %s2, %s169
      %p171 = pneg %p82
      %p172 = pneg %p79
      %p173 = pneg %p108
      %p174 = pneg %p105
      %s175 = smul.u32 30, %s14
      %p176 = scmp.lt.s32.totalorder %s175, 119
      %s177 = scalar_select %p176, %s175, 119
      %s178 = smul.addr %s177, 2
      %s179 = smul.addr %s178, 8
      %s180 = scalar_lea.vmem %s3, %s179
      %s181 = smul.u32 30, %s14
      %p182 = scmp.lt.s32.totalorder %s181, 119
      %s183 = scalar_select %p182, %s181, 119
      %s184 = smul.addr %s183, 2
      %s185 = smul.addr %s184, 8
      %s186 = scalar_lea.vmem %s0, %s185
      %s187 = smul.u32 30, %s14
      %s188 = smul.u32 30, %s14
      %p189 = scmp.lt.s32.totalorder %s188, 119
      %s190 = scalar_select %p189, %s188, 119
      %s191 = smul.addr %s190, 8
      %s192 = scalar_lea.vmem %s2, %s191
      %s193 = smul.u32 30, %s14
      %s194 = smul.u32 30, %s14
      %p195 = scmp.lt.s32.totalorder %s194, 119
      %s196 = scalar_select %p195, %s194, 119
      %s197 = smul.addr %s196, 2
      %s198 = smul.addr %s197, 8
      %s199 = scalar_lea.vmem %s3, %s198
      %s200 = smul.u32 30, %s14
      %v201 = vld [vmem:[%s186] sm:$0xff]
      %v202 = vld [vmem:[%s186 + $0x8] sm:$0xff]
      %v203 = vld [vmem:[%s186 + $0x10] sm:$0xff]
      %v204 = vld [vmem:[%s186 + $0x18] sm:$0xff]
      %v205 = vld [vmem:[%s186 + $0x20] sm:$0xff]
      %v206 = vld [vmem:[%s186 + $0x28] sm:$0xff]
      %v207 = vld [vmem:[%s186 + $0x30] sm:$0xff]
      %v208 = vld [vmem:[%s186 + $0x38] sm:$0xff]
      %v209 = vld [vmem:[%s186 + $0x40] sm:$0xff]
      %v210 = vld [vmem:[%s186 + $0x48] sm:$0xff]
      %v211 = vld [vmem:[%s186 + $0x50] sm:$0xff]
      %v212 = vld [vmem:[%s186 + $0x58] sm:$0xff]
      %v213 = vld [vmem:[%s186 + $0x60] sm:$0xff]
      %v214 = vld [vmem:[%s186 + $0x68] sm:$0xff]
      %v215 = vld [vmem:[%s186 + $0x70] sm:$0xff]
      %v216 = vld [vmem:[%s186 + $0x78] sm:$0xff]
      %v217 = vld [vmem:[%s186 + $0x80] sm:$0xff]
      %v218 = vld [vmem:[%s186 + $0x88] sm:$0xff]
      %v219 = vld [vmem:[%s186 + $0x90] sm:$0xff]
      %v220 = vld [vmem:[%s186 + $0x98] sm:$0xff]
      %v221 = vld [vmem:[%s186 + $0xa0] sm:$0xff]
      %v222 = vld [vmem:[%s186 + $0xa8] sm:$0xff]
      %v223 = vld [vmem:[%s186 + $0xb0] sm:$0xff]
      %v224 = vld [vmem:[%s186 + $0xb8] sm:$0xff]
      %v225 = vld [vmem:[%s186 + $0xc0] sm:$0xff]
      %v226 = vld [vmem:[%s186 + $0xc8] sm:$0xff]
      %v227 = vld [vmem:[%s186 + $0xd0] sm:$0xff]
      %v228 = vld [vmem:[%s186 + $0xd8] sm:$0xff]
      %v229 = vld [vmem:[%s186 + $0xe0] sm:$0xff]
      %v230 = vld [vmem:[%s186 + $0xe8] sm:$0xff]
      %v231 = vld [vmem:[%s186 + $0xf0] sm:$0xff]
      %v232 = vld [vmem:[%s186 + $0xf8] sm:$0xff]
      %v233 = vld [vmem:[%s186 + $0x100] sm:$0xff]
      %v234 = vld [vmem:[%s186 + $0x108] sm:$0xff]
      %v235 = vld [vmem:[%s186 + $0x110] sm:$0xff]
      %v236 = vld [vmem:[%s186 + $0x118] sm:$0xff]
      %v237 = vld [vmem:[%s186 + $0x120] sm:$0xff]
      %v238 = vld [vmem:[%s186 + $0x128] sm:$0xff]
      %v239 = vld [vmem:[%s186 + $0x130] sm:$0xff]
      %v240 = vld [vmem:[%s186 + $0x138] sm:$0xff]
      %v241 = vld [vmem:[%s186 + $0x140] sm:$0xff]
      %v242 = vld [vmem:[%s186 + $0x148] sm:$0xff]
      %v243 = vld [vmem:[%s186 + $0x150] sm:$0xff]
      %v244 = vld [vmem:[%s186 + $0x158] sm:$0xff]
      %v245 = vld [vmem:[%s186 + $0x160] sm:$0xff]
      %v246 = vld [vmem:[%s186 + $0x168] sm:$0xff]
      %v247 = vld [vmem:[%s186 + $0x170] sm:$0xff]
      %v248 = vld [vmem:[%s186 + $0x178] sm:$0xff]
      %v249 = vld [vmem:[%s186 + $0x180] sm:$0xff]
      %v250 = vld [vmem:[%s186 + $0x188] sm:$0xff]
      %v251 = vld [vmem:[%s186 + $0x190] sm:$0xff]
      %v252 = vld [vmem:[%s186 + $0x198] sm:$0xff]
      %v253 = vld [vmem:[%s186 + $0x1a0] sm:$0xff]
      %v254 = vld [vmem:[%s186 + $0x1a8] sm:$0xff]
      %v255 = vld [vmem:[%s186 + $0x1b0] sm:$0xff]
      %v256 = vld [vmem:[%s186 + $0x1b8] sm:$0xff]
      %v257 = vld [vmem:[%s186 + $0x1c0] sm:$0xff]
      %v258 = vld [vmem:[%s186 + $0x1c8] sm:$0xff]
      %v259 = vld [vmem:[%s186 + $0x1d0] sm:$0xff]
      %v260 = vld [vmem:[%s186 + $0x1d8] sm:$0xff]
      %v261 = vld [vmem:[%s1] sm:$0xff]
      %v262 = vld [vmem:[%s1 + $0x8] sm:$0xff]
      %v263 = vld [vmem:[%s1 + $0x10] sm:$0xff]
      %v264 = vld [vmem:[%s1 + $0x18] sm:$0xff]
      %v265 = vld [vmem:[%s1 + $0x20] sm:$0xff]
      %v266 = vld [vmem:[%s1 + $0x28] sm:$0xff]
      %v267 = vld [vmem:[%s1 + $0x30] sm:$0xff]
      %v268 = vld [vmem:[%s1 + $0x38] sm:$0xff]
      %v269 = vld [vmem:[%s1 + $0x40] sm:$0xff]
      %v270 = vld [vmem:[%s1 + $0x48] sm:$0xff]
      %v271 = vld [vmem:[%s1 + $0x50] sm:$0xff]
      %v272 = vld [vmem:[%s1 + $0x58] sm:$0xff]
      %v273 = vld [vmem:[%s1 + $0x60] sm:$0xff]
      %v274 = vld [vmem:[%s1 + $0x68] sm:$0xff]
      %v275 = vld [vmem:[%s1 + $0x70] sm:$0xff]
      %v276 = vld [vmem:[%s1 + $0x78] sm:$0xff]
      %v277 = vld [vmem:[%s1 + $0x80] sm:$0xff]
      %v278 = vld [vmem:[%s1 + $0x88] sm:$0xff]
      %v279 = vld [vmem:[%s1 + $0x90] sm:$0xff]
      %v280 = vld [vmem:[%s1 + $0x98] sm:$0xff]
      %v281 = vld [vmem:[%s1 + $0xa0] sm:$0xff]
      %v282 = vld [vmem:[%s1 + $0xa8] sm:$0xff]
      %v283 = vld [vmem:[%s1 + $0xb0] sm:$0xff]
      %v284 = vld [vmem:[%s1 + $0xb8] sm:$0xff]
      %v285 = vld [vmem:[%s1 + $0xc0] sm:$0xff]
      %v286 = vld [vmem:[%s1 + $0xc8] sm:$0xff]
      %v287 = vld [vmem:[%s1 + $0xd0] sm:$0xff]
      %v288 = vld [vmem:[%s1 + $0xd8] sm:$0xff]
      %v289 = vld [vmem:[%s1 + $0xe0] sm:$0xff]
      %v290 = vld [vmem:[%s1 + $0xe8] sm:$0xff]
      %v291 = vld [vmem:[%s1 + $0xf0] sm:$0xff]
      %v292 = vld [vmem:[%s1 + $0xf8] sm:$0xff]
      %v293 = vld [vmem:[%s1 + $0x100] sm:$0xff]
      %v294 = vld [vmem:[%s1 + $0x108] sm:$0xff]
      %v295 = vld [vmem:[%s1 + $0x110] sm:$0xff]
      %v296 = vld [vmem:[%s1 + $0x118] sm:$0xff]
      %v297 = vld [vmem:[%s1 + $0x120] sm:$0xff]
      %v298 = vld [vmem:[%s1 + $0x128] sm:$0xff]
      %v299 = vld [vmem:[%s1 + $0x130] sm:$0xff]
      %v300 = vld [vmem:[%s1 + $0x138] sm:$0xff]
      %vm301 = vcmask 261120
      %v303 = vsel %vm301, %v202, 0
      %v306 = vsel %vm301, %v204, 0
      %v309 = vsel %vm301, %v206, 0
      %v312 = vsel %vm301, %v208, 0
      %v315 = vsel %vm301, %v210, 0
      %v318 = vsel %vm301, %v212, 0
      %v321 = vsel %vm301, %v214, 0
      %v324 = vsel %vm301, %v216, 0
      %v327 = vsel %vm301, %v218, 0
      %v330 = vsel %vm301, %v220, 0
      %v333 = vsel %vm301, %v222, 0
      %v336 = vsel %vm301, %v224, 0
      %v339 = vsel %vm301, %v226, 0
      %v342 = vsel %vm301, %v228, 0
      %v345 = vsel %vm301, %v230, 0
      %v348 = vsel %vm301, %v232, 0
      %v351 = vsel %vm301, %v234, 0
      %v354 = vsel %vm301, %v236, 0
      %v357 = vsel %vm301, %v238, 0
      %v360 = vsel %vm301, %v240, 0
      %v363 = vsel %vm301, %v242, 0
      %v366 = vsel %vm301, %v244, 0
      %v369 = vsel %vm301, %v246, 0
      %v372 = vsel %vm301, %v248, 0
      %v375 = vsel %vm301, %v250, 0
      %v378 = vsel %vm301, %v252, 0
      %v381 = vsel %vm301, %v254, 0
      %v384 = vsel %vm301, %v256, 0
      %v387 = vsel %vm301, %v258, 0
      %v390 = vsel %vm301, %v260, 0
      %392 = vmatprep.subr.mxu0 %v292
      %393 = vmatpush1.msra.mxu0 %v291
      %394 = vmatprep.subr.mxu0 %v290
      %395 = vmatpush1.msra.mxu0 %v289
      %396 = vmatprep.subr.mxu0 %v288
      %397 = vmatpush1.msra.mxu0 %v287
      %398 = vmatprep.subr.mxu0 %v286
      %399 = vmatpush1.msra.mxu0 %v285
      %400 = vmatprep.subr.mxu0 %v284
      %401 = vmatpush1.msra.mxu0 %v283
      %402 = vmatprep.subr.mxu0 %v282
      %403 = vmatpush1.msra.mxu0 %v281
      %404 = vmatprep.subr.mxu0 %v280
      %405 = vmatpush1.msra.mxu0 %v279
      %406 = vmatprep.subr.mxu0 %v278
      %407 = vmatpush1.msra.mxu0 %v277
      %408 = vmatprep.subr.mxu0 %v276
      %409 = vmatpush1.msra.mxu0 %v275
      %410 = vmatprep.subr.mxu0 %v274
      %411 = vmatpush1.msra.mxu0 %v273
      %412 = vmatprep.subr.mxu0 %v272
      %413 = vmatpush1.msra.mxu0 %v271
      %414 = vmatprep.subr.mxu0 %v270
      %415 = vmatpush1.msra.mxu0 %v269
      %416 = vmatprep.subr.mxu0 %v268
      %417 = vmatpush1.msra.mxu0 %v267
      %418 = vmatprep.subr.mxu0 %v266
      %419 = vmatpush1.msra.mxu0 %v265
      %420 = vmatprep.subr.mxu0 %v264
      %421 = vmatpush1.msra.mxu0 %v263
      %422 = vmatprep.subr.mxu0 %v262
      %423 = vmatpush1.msra.mxu0 %v261
      %424 = vmatprep.subr.mxu0 0.0
      %425 = vmatpush2.msra.mxu0 0.0
      %426 = vmatprep.subr.mxu0 0.0
      %427 = vmatpush2.msra.mxu0 0.0
      %428 = vmatprep.subr.mxu0 0.0
      %429 = vmatpush2.msra.mxu0 0.0
      %430 = vmatprep.subr.mxu0 0.0
      %431 = vmatpush2.msra.mxu0 0.0
      %432 = vmatprep.subr.mxu0 0.0
      %433 = vmatpush2.msra.mxu0 0.0
      %434 = vmatprep.subr.mxu0 0.0
      %435 = vmatpush2.msra.mxu0 0.0
      %436 = vmatprep.subr.mxu0 0.0
      %437 = vmatpush2.msra.mxu0 0.0
      %438 = vmatprep.subr.mxu0 0.0
      %439 = vmatpush2.msra.mxu0 0.0
      %440 = vmatprep.subr.mxu0 0.0
      %441 = vmatpush2.msra.mxu0 0.0
      %442 = vmatprep.subr.mxu0 0.0
      %443 = vmatpush2.msra.mxu0 0.0
      %444 = vmatprep.subr.mxu0 0.0
      %445 = vmatpush2.msra.mxu0 0.0
      %446 = vmatprep.subr.mxu0 0.0
      %447 = vmatpush2.msra.mxu0 0.0
      %448 = vmatprep.subr.mxu0 %v300
      %449 = vmatpush2.msra.mxu0 %v299
      %450 = vmatprep.subr.mxu0 %v298
      %451 = vmatpush2.msra.mxu0 %v297
      %452 = vmatprep.subr.mxu0 %v296
      %453 = vmatpush2.msra.mxu0 %v295
      %454 = vmatprep.subr.mxu0 %v294
      %455 = vmatpush2.msra.mxu0 %v293
      %456 = vmatprep.mubr.f32.mxu0 %v303
      %457 = vmatmul.mubr.f32.gmra.mxu0 %v201
      %v458 = vpop.f32.mrf.mxu0
      %v459 = vadd.f32 0.0, %v458
      %v460 = vpop.f32.mrf.mxu0
      %v461 = vadd.f32 0.0, %v460
      %462 = vmatprep.mubr.f32.mxu0 %v306
      %463 = vmatmul.mubr.f32.gmra.mxu0 %v203
      %v464 = vpop.f32.mrf.mxu0
      %v465 = vadd.f32 0.0, %v464
      %v466 = vpop.f32.mrf.mxu0
      %v467 = vadd.f32 0.0, %v466
      %468 = vmatprep.mubr.f32.mxu0 %v309
      %469 = vmatmul.mubr.f32.gmra.mxu0 %v205
      %v470 = vpop.f32.mrf.mxu0
      %v471 = vadd.f32 0.0, %v470
      %v472 = vpop.f32.mrf.mxu0
      %v473 = vadd.f32 0.0, %v472
      %474 = vmatprep.mubr.f32.mxu0 %v312
      %475 = vmatmul.mubr.f32.gmra.mxu0 %v207
      %v476 = vpop.f32.mrf.mxu0
      %v477 = vadd.f32 0.0, %v476
      %v478 = vpop.f32.mrf.mxu0
      %v479 = vadd.f32 0.0, %v478
      %480 = vmatprep.mubr.f32.mxu0 %v315
      %481 = vmatmul.mubr.f32.gmra.mxu0 %v209
      %v482 = vpop.f32.mrf.mxu0
      %v483 = vadd.f32 0.0, %v482
      %v484 = vpop.f32.mrf.mxu0
      %v485 = vadd.f32 0.0, %v484
      %486 = vmatprep.mubr.f32.mxu0 %v318
      %487 = vmatmul.mubr.f32.gmra.mxu0 %v211
      %v488 = vpop.f32.mrf.mxu0
      %v489 = vadd.f32 0.0, %v488
      %v490 = vpop.f32.mrf.mxu0
      %v491 = vadd.f32 0.0, %v490
      %492 = vmatprep.mubr.f32.mxu0 %v321
      %493 = vmatmul.mubr.f32.gmra.mxu0 %v213
      %v494 = vpop.f32.mrf.mxu0
      %v495 = vadd.f32 0.0, %v494
      %v496 = vpop.f32.mrf.mxu0
      %v497 = vadd.f32 0.0, %v496
      %498 = vmatprep.mubr.f32.mxu0 %v324
      %499 = vmatmul.mubr.f32.gmra.mxu0 %v215
      %v500 = vpop.f32.mrf.mxu0
      %v501 = vadd.f32 0.0, %v500
      %v502 = vpop.f32.mrf.mxu0
      %v503 = vadd.f32 0.0, %v502
      %504 = vmatprep.mubr.f32.mxu0 %v327
      %505 = vmatmul.mubr.f32.gmra.mxu0 %v217
      %v506 = vpop.f32.mrf.mxu0
      %v507 = vadd.f32 0.0, %v506
      %v508 = vpop.f32.mrf.mxu0
      %v509 = vadd.f32 0.0, %v508
      %510 = vmatprep.mubr.f32.mxu0 %v330
      %511 = vmatmul.mubr.f32.gmra.mxu0 %v219
      %v512 = vpop.f32.mrf.mxu0
      %v513 = vadd.f32 0.0, %v512
      %v514 = vpop.f32.mrf.mxu0
      %v515 = vadd.f32 0.0, %v514
      %516 = vmatprep.mubr.f32.mxu0 %v333
      %517 = vmatmul.mubr.f32.gmra.mxu0 %v221
      %v518 = vpop.f32.mrf.mxu0
      %v519 = vadd.f32 0.0, %v518
      %v520 = vpop.f32.mrf.mxu0
      %v521 = vadd.f32 0.0, %v520
      %522 = vmatprep.mubr.f32.mxu0 %v336
      %523 = vmatmul.mubr.f32.gmra.mxu0 %v223
      %v524 = vpop.f32.mrf.mxu0
      %v525 = vadd.f32 0.0, %v524
      %v526 = vpop.f32.mrf.mxu0
      %v527 = vadd.f32 0.0, %v526
      %528 = vmatprep.mubr.f32.mxu0 %v339
      %529 = vmatmul.mubr.f32.gmra.mxu0 %v225
      %v530 = vpop.f32.mrf.mxu0
      %v531 = vadd.f32 0.0, %v530
      %v532 = vpop.f32.mrf.mxu0
      %v533 = vadd.f32 0.0, %v532
      %534 = vmatprep.mubr.f32.mxu0 %v342
      %535 = vmatmul.mubr.f32.gmra.mxu0 %v227
      %v536 = vpop.f32.mrf.mxu0
      %v537 = vadd.f32 0.0, %v536
      %v538 = vpop.f32.mrf.mxu0
      %v539 = vadd.f32 0.0, %v538
      %540 = vmatprep.mubr.f32.mxu0 %v345
      %541 = vmatmul.mubr.f32.gmra.mxu0 %v229
      %v542 = vpop.f32.mrf.mxu0
      %v543 = vadd.f32 0.0, %v542
      %v544 = vpop.f32.mrf.mxu0
      %v545 = vadd.f32 0.0, %v544
      %546 = vmatprep.mubr.f32.mxu0 %v348
      %547 = vmatmul.mubr.f32.gmra.mxu0 %v231
      %v548 = vpop.f32.mrf.mxu0
      %v549 = vadd.f32 0.0, %v548
      %v550 = vpop.f32.mrf.mxu0
      %v551 = vadd.f32 0.0, %v550
      %552 = vmatprep.mubr.f32.mxu0 %v351
      %553 = vmatmul.mubr.f32.gmra.mxu0 %v233
      %v554 = vpop.f32.mrf.mxu0
      %v555 = vadd.f32 0.0, %v554
      %v556 = vpop.f32.mrf.mxu0
      %v557 = vadd.f32 0.0, %v556
      %558 = vmatprep.mubr.f32.mxu0 %v354
      %559 = vmatmul.mubr.f32.gmra.mxu0 %v235
      %v560 = vpop.f32.mrf.mxu0
      %v561 = vadd.f32 0.0, %v560
      %v562 = vpop.f32.mrf.mxu0
      %v563 = vadd.f32 0.0, %v562
      %564 = vmatprep.mubr.f32.mxu0 %v357
      %565 = vmatmul.mubr.f32.gmra.mxu0 %v237
      %v566 = vpop.f32.mrf.mxu0
      %v567 = vadd.f32 0.0, %v566
      %v568 = vpop.f32.mrf.mxu0
      %v569 = vadd.f32 0.0, %v568
      %570 = vmatprep.mubr.f32.mxu0 %v360
      %571 = vmatmul.mubr.f32.gmra.mxu0 %v239
      %v572 = vpop.f32.mrf.mxu0
      %v573 = vadd.f32 0.0, %v572
      %v574 = vpop.f32.mrf.mxu0
      %v575 = vadd.f32 0.0, %v574
      %576 = vmatprep.mubr.f32.mxu0 %v363
      %577 = vmatmul.mubr.f32.gmra.mxu0 %v241
      %v578 = vpop.f32.mrf.mxu0
      %v579 = vadd.f32 0.0, %v578
      %v580 = vpop.f32.mrf.mxu0
      %v581 = vadd.f32 0.0, %v580
      %582 = vmatprep.mubr.f32.mxu0 %v366
      %583 = vmatmul.mubr.f32.gmra.mxu0 %v243
      %v584 = vpop.f32.mrf.mxu0
      %v585 = vadd.f32 0.0, %v584
      %v586 = vpop.f32.mrf.mxu0
      %v587 = vadd.f32 0.0, %v586
      %588 = vmatprep.mubr.f32.mxu0 %v369
      %589 = vmatmul.mubr.f32.gmra.mxu0 %v245
      %v590 = vpop.f32.mrf.mxu0
      %v591 = vadd.f32 0.0, %v590
      %v592 = vpop.f32.mrf.mxu0
      %v593 = vadd.f32 0.0, %v592
      %594 = vmatprep.mubr.f32.mxu0 %v372
      %595 = vmatmul.mubr.f32.gmra.mxu0 %v247
      %v596 = vpop.f32.mrf.mxu0
      %v597 = vadd.f32 0.0, %v596
      %v598 = vpop.f32.mrf.mxu0
      %v599 = vadd.f32 0.0, %v598
      %600 = vmatprep.mubr.f32.mxu0 %v375
      %601 = vmatmul.mubr.f32.gmra.mxu0 %v249
      %v602 = vpop.f32.mrf.mxu0
      %v603 = vadd.f32 0.0, %v602
      %v604 = vpop.f32.mrf.mxu0
      %v605 = vadd.f32 0.0, %v604
      %606 = vmatprep.mubr.f32.mxu0 %v378
      %607 = vmatmul.mubr.f32.gmra.mxu0 %v251
      %v608 = vpop.f32.mrf.mxu0
      %v609 = vadd.f32 0.0, %v608
      %v610 = vpop.f32.mrf.mxu0
      %v611 = vadd.f32 0.0, %v610
      %612 = vmatprep.mubr.f32.mxu0 %v381
      %613 = vmatmul.mubr.f32.gmra.mxu0 %v253
      %v614 = vpop.f32.mrf.mxu0
      %v615 = vadd.f32 0.0, %v614
      %v616 = vpop.f32.mrf.mxu0
      %v617 = vadd.f32 0.0, %v616
      %618 = vmatprep.mubr.f32.mxu0 %v384
      %619 = vmatmul.mubr.f32.gmra.mxu0 %v255
      %v620 = vpop.f32.mrf.mxu0
      %v621 = vadd.f32 0.0, %v620
      %v622 = vpop.f32.mrf.mxu0
      %v623 = vadd.f32 0.0, %v622
      %624 = vmatprep.mubr.f32.mxu0 %v387
      %625 = vmatmul.mubr.f32.gmra.mxu0 %v257
      %v626 = vpop.f32.mrf.mxu0
      %v627 = vadd.f32 0.0, %v626
      %v628 = vpop.f32.mrf.mxu0
      %v629 = vadd.f32 0.0, %v628
      %630 = vmatprep.mubr.f32.mxu0 %v390
      %631 = vmatmul.mubr.f32.gmra.mxu0 %v259
      %v632 = vpop.f32.mrf.mxu0
      %v633 = vadd.f32 0.0, %v632
      %v634 = vpop.f32.mrf.mxu0
      %v635 = vadd.f32 0.0, %v634
      %636 = vdwg.mxu0
      %vm637 = vcmask 556032
      %v638 = vsel %vm637, %v461, 0.0
      %v639 = vadd.f32 %v459, %v638
      %640 = vadd.xlane.f32.xlu0 %v639
      %v641 = vpop.xlane.xlu0 %640
      %v642 = vsel %vm637, %v467, 0.0
      %v643 = vadd.f32 %v465, %v642
      %644 = vadd.xlane.f32.xlu0 %v643
      %v645 = vpop.xlane.xlu0 %644
      %v646 = vsel %vm637, %v473, 0.0
      %v647 = vadd.f32 %v471, %v646
      %648 = vadd.xlane.f32.xlu0 %v647
      %v649 = vpop.xlane.xlu0 %648
      %v650 = vsel %vm637, %v479, 0.0
      %v651 = vadd.f32 %v477, %v650
      %652 = vadd.xlane.f32.xlu0 %v651
      %v653 = vpop.xlane.xlu0 %652
      %v654 = vsel %vm637, %v485, 0.0
      %v655 = vadd.f32 %v483, %v654
      %656 = vadd.xlane.f32.xlu0 %v655
      %v657 = vpop.xlane.xlu0 %656
      %v658 = vsel %vm637, %v491, 0.0
      %v659 = vadd.f32 %v489, %v658
      %660 = vadd.xlane.f32.xlu0 %v659
      %v661 = vpop.xlane.xlu0 %660
      %v662 = vsel %vm637, %v497, 0.0
      %v663 = vadd.f32 %v495, %v662
      %664 = vadd.xlane.f32.xlu0 %v663
      %v665 = vpop.xlane.xlu0 %664
      %v666 = vsel %vm637, %v503, 0.0
      %v667 = vadd.f32 %v501, %v666
      %668 = vadd.xlane.f32.xlu0 %v667
      %v669 = vpop.xlane.xlu0 %668
      %v670 = vsel %vm637, %v509, 0.0
      %v671 = vadd.f32 %v507, %v670
      %672 = vadd.xlane.f32.xlu0 %v671
      %v673 = vpop.xlane.xlu0 %672
      %v674 = vsel %vm637, %v515, 0.0
      %v675 = vadd.f32 %v513, %v674
      %676 = vadd.xlane.f32.xlu0 %v675
      %v677 = vpop.xlane.xlu0 %676
      %v678 = vsel %vm637, %v521, 0.0
      %v679 = vadd.f32 %v519, %v678
      %680 = vadd.xlane.f32.xlu0 %v679
      %v681 = vpop.xlane.xlu0 %680
      %v682 = vsel %vm637, %v527, 0.0
      %v683 = vadd.f32 %v525, %v682
      %684 = vadd.xlane.f32.xlu0 %v683
      %v685 = vpop.xlane.xlu0 %684
      %v686 = vsel %vm637, %v533, 0.0
      %v687 = vadd.f32 %v531, %v686
      %688 = vadd.xlane.f32.xlu0 %v687
      %v689 = vpop.xlane.xlu0 %688
      %v690 = vsel %vm637, %v539, 0.0
      %v691 = vadd.f32 %v537, %v690
      %692 = vadd.xlane.f32.xlu0 %v691
      %v693 = vpop.xlane.xlu0 %692
      %v694 = vsel %vm637, %v545, 0.0
      %v695 = vadd.f32 %v543, %v694
      %696 = vadd.xlane.f32.xlu0 %v695
      %v697 = vpop.xlane.xlu0 %696
      %v698 = vsel %vm637, %v551, 0.0
      %v699 = vadd.f32 %v549, %v698
      %700 = vadd.xlane.f32.xlu0 %v699
      %v701 = vpop.xlane.xlu0 %700
      %v702 = vsel %vm637, %v557, 0.0
      %v703 = vadd.f32 %v555, %v702
      %704 = vadd.xlane.f32.xlu0 %v703
      %v705 = vpop.xlane.xlu0 %704
      %v706 = vsel %vm637, %v563, 0.0
      %v707 = vadd.f32 %v561, %v706
      %708 = vadd.xlane.f32.xlu0 %v707
      %v709 = vpop.xlane.xlu0 %708
      %v710 = vsel %vm637, %v569, 0.0
      %v711 = vadd.f32 %v567, %v710
      %712 = vadd.xlane.f32.xlu0 %v711
      %v713 = vpop.xlane.xlu0 %712
      %v714 = vsel %vm637, %v575, 0.0
      %v715 = vadd.f32 %v573, %v714
      %716 = vadd.xlane.f32.xlu0 %v715
      %v717 = vpop.xlane.xlu0 %716
      %v718 = vsel %vm637, %v581, 0.0
      %v719 = vadd.f32 %v579, %v718
      %720 = vadd.xlane.f32.xlu0 %v719
      %v721 = vpop.xlane.xlu0 %720
      %v722 = vsel %vm637, %v587, 0.0
      %v723 = vadd.f32 %v585, %v722
      %724 = vadd.xlane.f32.xlu0 %v723
      %v725 = vpop.xlane.xlu0 %724
      %v726 = vsel %vm637, %v593, 0.0
      %v727 = vadd.f32 %v591, %v726
      %728 = vadd.xlane.f32.xlu0 %v727
      %v729 = vpop.xlane.xlu0 %728
      %v730 = vsel %vm637, %v599, 0.0
      %v731 = vadd.f32 %v597, %v730
      %732 = vadd.xlane.f32.xlu0 %v731
      %v733 = vpop.xlane.xlu0 %732
      %v734 = vsel %vm637, %v605, 0.0
      %v735 = vadd.f32 %v603, %v734
      %736 = vadd.xlane.f32.xlu0 %v735
      %v737 = vpop.xlane.xlu0 %736
      %v738 = vsel %vm637, %v611, 0.0
      %v739 = vadd.f32 %v609, %v738
      %740 = vadd.xlane.f32.xlu0 %v739
      %v741 = vpop.xlane.xlu0 %740
      %v742 = vsel %vm637, %v617, 0.0
      %v743 = vadd.f32 %v615, %v742
      %744 = vadd.xlane.f32.xlu0 %v743
      %v745 = vpop.xlane.xlu0 %744
      %v746 = vsel %vm637, %v623, 0.0
      %v747 = vadd.f32 %v621, %v746
      %748 = vadd.xlane.f32.xlu0 %v747
      %v749 = vpop.xlane.xlu0 %748
      %v750 = vsel %vm637, %v629, 0.0
      %v751 = vadd.f32 %v627, %v750
      %752 = vadd.xlane.f32.xlu0 %v751
      %v753 = vpop.xlane.xlu0 %752
      %v754 = vsel %vm637, %v635, 0.0
      %v755 = vadd.f32 %v633, %v754
      %756 = vadd.xlane.f32.xlu0 %v755
      %v757 = vpop.xlane.xlu0 %756
      %v758 = vmul.f32 %v459, %v459
      %v759 = vmul.f32 %v461, %v461
      %v760 = vmul.f32 %v465, %v465
      %v761 = vmul.f32 %v467, %v467
      %v762 = vmul.f32 %v471, %v471
      %v763 = vmul.f32 %v473, %v473
      %v764 = vmul.f32 %v477, %v477
      %v765 = vmul.f32 %v479, %v479
      %v766 = vmul.f32 %v483, %v483
      %v767 = vmul.f32 %v485, %v485
      %v768 = vmul.f32 %v489, %v489
      %v769 = vmul.f32 %v491, %v491
      %v770 = vmul.f32 %v495, %v495
      %v771 = vmul.f32 %v497, %v497
      %v772 = vmul.f32 %v501, %v501
      %v773 = vmul.f32 %v503, %v503
      %v774 = vmul.f32 %v507, %v507
      %v775 = vmul.f32 %v509, %v509
      %v776 = vmul.f32 %v513, %v513
      %v777 = vmul.f32 %v515, %v515
      %v778 = vmul.f32 %v519, %v519
      %v779 = vmul.f32 %v521, %v521
      %v780 = vmul.f32 %v525, %v525
      %v781 = vmul.f32 %v527, %v527
      %v782 = vmul.f32 %v531, %v531
      %v783 = vmul.f32 %v533, %v533
      %v784 = vmul.f32 %v537, %v537
      %v785 = vmul.f32 %v539, %v539
      %v786 = vmul.f32 %v543, %v543
      %v787 = vmul.f32 %v545, %v545
      %v788 = vmul.f32 %v549, %v549
      %v789 = vmul.f32 %v551, %v551
      %v790 = vmul.f32 %v555, %v555
      %v791 = vmul.f32 %v557, %v557
      %v792 = vmul.f32 %v561, %v561
      %v793 = vmul.f32 %v563, %v563
      %v794 = vmul.f32 %v567, %v567
      %v795 = vmul.f32 %v569, %v569
      %v796 = vmul.f32 %v573, %v573
      %v797 = vmul.f32 %v575, %v575
      %v798 = vmul.f32 %v579, %v579
      %v799 = vmul.f32 %v581, %v581
      %v800 = vmul.f32 %v585, %v585
      %v801 = vmul.f32 %v587, %v587
      %v802 = vmul.f32 %v591, %v591
      %v803 = vmul.f32 %v593, %v593
      %v804 = vmul.f32 %v597, %v597
      %v805 = vmul.f32 %v599, %v599
      %v806 = vmul.f32 %v603, %v603
      %v807 = vmul.f32 %v605, %v605
      %v808 = vmul.f32 %v609, %v609
      %v809 = vmul.f32 %v611, %v611
      %v810 = vmul.f32 %v615, %v615
      %v811 = vmul.f32 %v617, %v617
      %v812 = vmul.f32 %v621, %v621
      %v813 = vmul.f32 %v623, %v623
      %v814 = vmul.f32 %v627, %v627
      %v815 = vmul.f32 %v629, %v629
      %v816 = vmul.f32 %v633, %v633
      %v817 = vmul.f32 %v635, %v635
      %v818 = vsel %vm637, %v759, 0.0
      %v819 = vadd.f32 %v758, %v818
      %820 = vadd.xlane.f32.xlu0 %v819
      %v821 = vpop.xlane.xlu0 %820
      %v822 = vsel %vm637, %v761, 0.0
      %v823 = vadd.f32 %v760, %v822
      %824 = vadd.xlane.f32.xlu0 %v823
      %v825 = vpop.xlane.xlu0 %824
      %v826 = vsel %vm637, %v763, 0.0
      %v827 = vadd.f32 %v762, %v826
      %828 = vadd.xlane.f32.xlu0 %v827
      %v829 = vpop.xlane.xlu0 %828
      %v830 = vsel %vm637, %v765, 0.0
      %v831 = vadd.f32 %v764, %v830
      %832 = vadd.xlane.f32.xlu0 %v831
      %v833 = vpop.xlane.xlu0 %832
      %v834 = vsel %vm637, %v767, 0.0
      %v835 = vadd.f32 %v766, %v834
      %836 = vadd.xlane.f32.xlu0 %v835
      %v837 = vpop.xlane.xlu0 %836
      %v838 = vsel %vm637, %v769, 0.0
      %v839 = vadd.f32 %v768, %v838
      %840 = vadd.xlane.f32.xlu0 %v839
      %v841 = vpop.xlane.xlu0 %840
      %v842 = vsel %vm637, %v771, 0.0
      %v843 = vadd.f32 %v770, %v842
      %844 = vadd.xlane.f32.xlu0 %v843
      %v845 = vpop.xlane.xlu0 %844
      %v846 = vsel %vm637, %v773, 0.0
      %v847 = vadd.f32 %v772, %v846
      %848 = vadd.xlane.f32.xlu0 %v847
      %v849 = vpop.xlane.xlu0 %848
      %v850 = vsel %vm637, %v775, 0.0
      %v851 = vadd.f32 %v774, %v850
      %852 = vadd.xlane.f32.xlu0 %v851
      %v853 = vpop.xlane.xlu0 %852
      %v854 = vsel %vm637, %v777, 0.0
      %v855 = vadd.f32 %v776, %v854
      %856 = vadd.xlane.f32.xlu0 %v855
      %v857 = vpop.xlane.xlu0 %856
      %v858 = vsel %vm637, %v779, 0.0
      %v859 = vadd.f32 %v778, %v858
      %860 = vadd.xlane.f32.xlu0 %v859
      %v861 = vpop.xlane.xlu0 %860
      %v862 = vsel %vm637, %v781, 0.0
      %v863 = vadd.f32 %v780, %v862
      %864 = vadd.xlane.f32.xlu0 %v863
      %v865 = vpop.xlane.xlu0 %864
      %v866 = vsel %vm637, %v783, 0.0
      %v867 = vadd.f32 %v782, %v866
      %868 = vadd.xlane.f32.xlu0 %v867
      %v869 = vpop.xlane.xlu0 %868
      %v870 = vsel %vm637, %v785, 0.0
      %v871 = vadd.f32 %v784, %v870
      %872 = vadd.xlane.f32.xlu0 %v871
      %v873 = vpop.xlane.xlu0 %872
      %v874 = vsel %vm637, %v787, 0.0
      %v875 = vadd.f32 %v786, %v874
      %876 = vadd.xlane.f32.xlu0 %v875
      %v877 = vpop.xlane.xlu0 %876
      %v878 = vsel %vm637, %v789, 0.0
      %v879 = vadd.f32 %v788, %v878
      %880 = vadd.xlane.f32.xlu0 %v879
      %v881 = vpop.xlane.xlu0 %880
      %v882 = vsel %vm637, %v791, 0.0
      %v883 = vadd.f32 %v790, %v882
      %884 = vadd.xlane.f32.xlu0 %v883
      %v885 = vpop.xlane.xlu0 %884
      %v886 = vsel %vm637, %v793, 0.0
      %v887 = vadd.f32 %v792, %v886
      %888 = vadd.xlane.f32.xlu0 %v887
      %v889 = vpop.xlane.xlu0 %888
      %v890 = vsel %vm637, %v795, 0.0
      %v891 = vadd.f32 %v794, %v890
      %892 = vadd.xlane.f32.xlu0 %v891
      %v893 = vpop.xlane.xlu0 %892
      %v894 = vsel %vm637, %v797, 0.0
      %v895 = vadd.f32 %v796, %v894
      %896 = vadd.xlane.f32.xlu0 %v895
      %v897 = vpop.xlane.xlu0 %896
      %v898 = vsel %vm637, %v799, 0.0
      %v899 = vadd.f32 %v798, %v898
      %900 = vadd.xlane.f32.xlu0 %v899
      %v901 = vpop.xlane.xlu0 %900
      %v902 = vsel %vm637, %v801, 0.0
      %v903 = vadd.f32 %v800, %v902
      %904 = vadd.xlane.f32.xlu0 %v903
      %v905 = vpop.xlane.xlu0 %904
      %v906 = vsel %vm637, %v803, 0.0
      %v907 = vadd.f32 %v802, %v906
      %908 = vadd.xlane.f32.xlu0 %v907
      %v909 = vpop.xlane.xlu0 %908
      %v910 = vsel %vm637, %v805, 0.0
      %v911 = vadd.f32 %v804, %v910
      %912 = vadd.xlane.f32.xlu0 %v911
      %v913 = vpop.xlane.xlu0 %912
      %v914 = vsel %vm637, %v807, 0.0
      %v915 = vadd.f32 %v806, %v914
      %916 = vadd.xlane.f32.xlu0 %v915
      %v917 = vpop.xlane.xlu0 %916
      %v918 = vsel %vm637, %v809, 0.0
      %v919 = vadd.f32 %v808, %v918
      %920 = vadd.xlane.f32.xlu0 %v919
      %v921 = vpop.xlane.xlu0 %920
      %v922 = vsel %vm637, %v811, 0.0
      %v923 = vadd.f32 %v810, %v922
      %924 = vadd.xlane.f32.xlu0 %v923
      %v925 = vpop.xlane.xlu0 %924
      %v926 = vsel %vm637, %v813, 0.0
      %v927 = vadd.f32 %v812, %v926
      %928 = vadd.xlane.f32.xlu0 %v927
      %v929 = vpop.xlane.xlu0 %928
      %v930 = vsel %vm637, %v815, 0.0
      %v931 = vadd.f32 %v814, %v930
      %932 = vadd.xlane.f32.xlu0 %v931
      %v933 = vpop.xlane.xlu0 %932
      %v934 = vsel %vm637, %v817, 0.0
      %v935 = vadd.f32 %v816, %v934
      %936 = vadd.xlane.f32.xlu0 %v935
      %v937 = vpop.xlane.xlu0 %936
      %v938 = vmul.f32 %v641, 0.0051020407
      %v939 = vmul.f32 %v645, 0.0051020407
      %v940 = vmul.f32 %v649, 0.0051020407
      %v941 = vmul.f32 %v653, 0.0051020407
      %v942 = vmul.f32 %v657, 0.0051020407
      %v943 = vmul.f32 %v661, 0.0051020407
      %v944 = vmul.f32 %v665, 0.0051020407
      %v945 = vmul.f32 %v669, 0.0051020407
      %v946 = vmul.f32 %v673, 0.0051020407
      %v947 = vmul.f32 %v677, 0.0051020407
      %v948 = vmul.f32 %v681, 0.0051020407
      %v949 = vmul.f32 %v685, 0.0051020407
      %v950 = vmul.f32 %v689, 0.0051020407
      %v951 = vmul.f32 %v693, 0.0051020407
      %v952 = vmul.f32 %v697, 0.0051020407
      %v953 = vmul.f32 %v701, 0.0051020407
      %v954 = vmul.f32 %v705, 0.0051020407
      %v955 = vmul.f32 %v709, 0.0051020407
      %v956 = vmul.f32 %v713, 0.0051020407
      %v957 = vmul.f32 %v717, 0.0051020407
      %v958 = vmul.f32 %v721, 0.0051020407
      %v959 = vmul.f32 %v725, 0.0051020407
      %v960 = vmul.f32 %v729, 0.0051020407
      %v961 = vmul.f32 %v733, 0.0051020407
      %v962 = vmul.f32 %v737, 0.0051020407
      %v963 = vmul.f32 %v741, 0.0051020407
      %v964 = vmul.f32 %v745, 0.0051020407
      %v965 = vmul.f32 %v749, 0.0051020407
      %v966 = vmul.f32 %v753, 0.0051020407
      %v967 = vmul.f32 %v757, 0.0051020407
      %v968 = vmul.f32 %v821, 0.0051020407
      %v969 = vmul.f32 %v825, 0.0051020407
      %v970 = vmul.f32 %v829, 0.0051020407
      %v971 = vmul.f32 %v833, 0.0051020407
      %v972 = vmul.f32 %v837, 0.0051020407
      %v973 = vmul.f32 %v841, 0.0051020407
      %v974 = vmul.f32 %v845, 0.0051020407
      %v975 = vmul.f32 %v849, 0.0051020407
      %v976 = vmul.f32 %v853, 0.0051020407
      %v977 = vmul.f32 %v857, 0.0051020407
      %v978 = vmul.f32 %v861, 0.0051020407
      %v979 = vmul.f32 %v865, 0.0051020407
      %v980 = vmul.f32 %v869, 0.0051020407
      %v981 = vmul.f32 %v873, 0.0051020407
      %v982 = vmul.f32 %v877, 0.0051020407
      %v983 = vmul.f32 %v881, 0.0051020407
      %v984 = vmul.f32 %v885, 0.0051020407
      %v985 = vmul.f32 %v889, 0.0051020407
      %v986 = vmul.f32 %v893, 0.0051020407
      %v987 = vmul.f32 %v897, 0.0051020407
      %v988 = vmul.f32 %v901, 0.0051020407
      %v989 = vmul.f32 %v905, 0.0051020407
      %v990 = vmul.f32 %v909, 0.0051020407
      %v991 = vmul.f32 %v913, 0.0051020407
      %v992 = vmul.f32 %v917, 0.0051020407
      %v993 = vmul.f32 %v921, 0.0051020407
      %v994 = vmul.f32 %v925, 0.0051020407
      %v995 = vmul.f32 %v929, 0.0051020407
      %v996 = vmul.f32 %v933, 0.0051020407
      %v997 = vmul.f32 %v937, 0.0051020407
      %v998 = vmul.f32 %v938, %v938
      %v999 = vmul.f32 %v939, %v939
      %v1000 = vmul.f32 %v940, %v940
      %v1001 = vmul.f32 %v941, %v941
      %v1002 = vmul.f32 %v942, %v942
      %v1003 = vmul.f32 %v943, %v943
      %v1004 = vmul.f32 %v944, %v944
      %v1005 = vmul.f32 %v945, %v945
      %v1006 = vmul.f32 %v946, %v946
      %v1007 = vmul.f32 %v947, %v947
      %v1008 = vmul.f32 %v948, %v948
      %v1009 = vmul.f32 %v949, %v949
      %v1010 = vmul.f32 %v950, %v950
      %v1011 = vmul.f32 %v951, %v951
      %v1012 = vmul.f32 %v952, %v952
      %v1013 = vmul.f32 %v953, %v953
      %v1014 = vmul.f32 %v954, %v954
      %v1015 = vmul.f32 %v955, %v955
      %v1016 = vmul.f32 %v956, %v956
      %v1017 = vmul.f32 %v957, %v957
      %v1018 = vmul.f32 %v958, %v958
      %v1019 = vmul.f32 %v959, %v959
      %v1020 = vmul.f32 %v960, %v960
      %v1021 = vmul.f32 %v961, %v961
      %v1022 = vmul.f32 %v962, %v962
      %v1023 = vmul.f32 %v963, %v963
      %v1024 = vmul.f32 %v964, %v964
      %v1025 = vmul.f32 %v965, %v965
      %v1026 = vmul.f32 %v966, %v966
      %v1027 = vmul.f32 %v967, %v967
      %v1028 = vsub.f32 %v968, %v998
      %v1029 = vsub.f32 %v969, %v999
      %v1030 = vsub.f32 %v970, %v1000
      %v1031 = vsub.f32 %v971, %v1001
      %v1032 = vsub.f32 %v972, %v1002
      %v1033 = vsub.f32 %v973, %v1003
      %v1034 = vsub.f32 %v974, %v1004
      %v1035 = vsub.f32 %v975, %v1005
      %v1036 = vsub.f32 %v976, %v1006
      %v1037 = vsub.f32 %v977, %v1007
      %v1038 = vsub.f32 %v978, %v1008
      %v1039 = vsub.f32 %v979, %v1009
      %v1040 = vsub.f32 %v980, %v1010
      %v1041 = vsub.f32 %v981, %v1011
      %v1042 = vsub.f32 %v982, %v1012
      %v1043 = vsub.f32 %v983, %v1013
      %v1044 = vsub.f32 %v984, %v1014
      %v1045 = vsub.f32 %v985, %v1015
      %v1046 = vsub.f32 %v986, %v1016
      %v1047 = vsub.f32 %v987, %v1017
      %v1048 = vsub.f32 %v988, %v1018
      %v1049 = vsub.f32 %v989, %v1019
      %v1050 = vsub.f32 %v990, %v1020
      %v1051 = vsub.f32 %v991, %v1021
      %v1052 = vsub.f32 %v992, %v1022
      %v1053 = vsub.f32 %v993, %v1023
      %v1054 = vsub.f32 %v994, %v1024
      %v1055 = vsub.f32 %v995, %v1025
      %v1056 = vsub.f32 %v996, %v1026
      %v1057 = vsub.f32 %v997, %v1027
      %v1058 = vmax.f32 %v1028, 0.0
      %v1059 = vmax.f32 %v1029, 0.0
      %v1060 = vmax.f32 %v1030, 0.0
      %v1061 = vmax.f32 %v1031, 0.0
      %v1062 = vmax.f32 %v1032, 0.0
      %v1063 = vmax.f32 %v1033, 0.0
      %v1064 = vmax.f32 %v1034, 0.0
      %v1065 = vmax.f32 %v1035, 0.0
      %v1066 = vmax.f32 %v1036, 0.0
      %v1067 = vmax.f32 %v1037, 0.0
      %v1068 = vmax.f32 %v1038, 0.0
      %v1069 = vmax.f32 %v1039, 0.0
      %v1070 = vmax.f32 %v1040, 0.0
      %v1071 = vmax.f32 %v1041, 0.0
      %v1072 = vmax.f32 %v1042, 0.0
      %v1073 = vmax.f32 %v1043, 0.0
      %v1074 = vmax.f32 %v1044, 0.0
      %v1075 = vmax.f32 %v1045, 0.0
      %v1076 = vmax.f32 %v1046, 0.0
      %v1077 = vmax.f32 %v1047, 0.0
      %v1078 = vmax.f32 %v1048, 0.0
      %v1079 = vmax.f32 %v1049, 0.0
      %v1080 = vmax.f32 %v1050, 0.0
      %v1081 = vmax.f32 %v1051, 0.0
      %v1082 = vmax.f32 %v1052, 0.0
      %v1083 = vmax.f32 %v1053, 0.0
      %v1084 = vmax.f32 %v1054, 0.0
      %v1085 = vmax.f32 %v1055, 0.0
      %v1086 = vmax.f32 %v1056, 0.0
      %v1087 = vmax.f32 %v1057, 0.0
      %v1088 = vadd.f32 %v1058, 0.001
      %v1089 = vadd.f32 %v1059, 0.001
      %v1090 = vadd.f32 %v1060, 0.001
      %v1091 = vadd.f32 %v1061, 0.001
      %v1092 = vadd.f32 %v1062, 0.001
      %v1093 = vadd.f32 %v1063, 0.001
      %v1094 = vadd.f32 %v1064, 0.001
      %v1095 = vadd.f32 %v1065, 0.001
      %v1096 = vadd.f32 %v1066, 0.001
      %v1097 = vadd.f32 %v1067, 0.001
      %v1098 = vadd.f32 %v1068, 0.001
      %v1099 = vadd.f32 %v1069, 0.001
      %v1100 = vadd.f32 %v1070, 0.001
      %v1101 = vadd.f32 %v1071, 0.001
      %v1102 = vadd.f32 %v1072, 0.001
      %v1103 = vadd.f32 %v1073, 0.001
      %v1104 = vadd.f32 %v1074, 0.001
      %v1105 = vadd.f32 %v1075, 0.001
      %v1106 = vadd.f32 %v1076, 0.001
      %v1107 = vadd.f32 %v1077, 0.001
      %v1108 = vadd.f32 %v1078, 0.001
      %v1109 = vadd.f32 %v1079, 0.001
      %v1110 = vadd.f32 %v1080, 0.001
      %v1111 = vadd.f32 %v1081, 0.001
      %v1112 = vadd.f32 %v1082, 0.001
      %v1113 = vadd.f32 %v1083, 0.001
      %v1114 = vadd.f32 %v1084, 0.001
      %v1115 = vadd.f32 %v1085, 0.001
      %v1116 = vadd.f32 %v1086, 0.001
      %v1117 = vadd.f32 %v1087, 0.001
      %v1118 = vrsqrt.pop %v1088
      %v1119 = vrsqrt.pop %v1089
      %v1120 = vrsqrt.pop %v1090
      %v1121 = vrsqrt.pop %v1091
      %v1122 = vrsqrt.pop %v1092
      %v1123 = vrsqrt.pop %v1093
      %v1124 = vrsqrt.pop %v1094
      %v1125 = vrsqrt.pop %v1095
      %v1126 = vrsqrt.pop %v1096
      %v1127 = vrsqrt.pop %v1097
      %v1128 = vrsqrt.pop %v1098
      %v1129 = vrsqrt.pop %v1099
      %v1130 = vrsqrt.pop %v1100
      %v1131 = vrsqrt.pop %v1101
      %v1132 = vrsqrt.pop %v1102
      %v1133 = vrsqrt.pop %v1103
      %v1134 = vrsqrt.pop %v1104
      %v1135 = vrsqrt.pop %v1105
      %v1136 = vrsqrt.pop %v1106
      %v1137 = vrsqrt.pop %v1107
      %v1138 = vrsqrt.pop %v1108
      %v1139 = vrsqrt.pop %v1109
      %v1140 = vrsqrt.pop %v1110
      %v1141 = vrsqrt.pop %v1111
      %v1142 = vrsqrt.pop %v1112
      %v1143 = vrsqrt.pop %v1113
      %v1144 = vrsqrt.pop %v1114
      %v1145 = vrsqrt.pop %v1115
      %v1146 = vrsqrt.pop %v1116
      %v1147 = vrsqrt.pop %v1117
      %v1148 = vld [vmem:[%s192] sm:$0xff]
      %v1149 = vld [vmem:[%s192 + $0x8] sm:$0xff]
      %v1150 = vld [vmem:[%s192 + $0x10] sm:$0xff]
      %v1151 = vld [vmem:[%s192 + $0x18] sm:$0xff]
      %v1152 = vld [vmem:[%s192 + $0x20] sm:$0xff]
      %v1153 = vld [vmem:[%s192 + $0x28] sm:$0xff]
      %v1154 = vld [vmem:[%s192 + $0x30] sm:$0xff]
      %v1155 = vld [vmem:[%s192 + $0x38] sm:$0xff]
      %v1156 = vld [vmem:[%s192 + $0x40] sm:$0xff]
      %v1157 = vld [vmem:[%s192 + $0x48] sm:$0xff]
      %v1158 = vld [vmem:[%s192 + $0x50] sm:$0xff]
      %v1159 = vld [vmem:[%s192 + $0x58] sm:$0xff]
      %v1160 = vld [vmem:[%s192 + $0x60] sm:$0xff]
      %v1161 = vld [vmem:[%s192 + $0x68] sm:$0xff]
      %v1162 = vld [vmem:[%s192 + $0x70] sm:$0xff]
      %v1163 = vld [vmem:[%s192 + $0x78] sm:$0xff]
      %v1164 = vld [vmem:[%s192 + $0x80] sm:$0xff]
      %v1165 = vld [vmem:[%s192 + $0x88] sm:$0xff]
      %v1166 = vld [vmem:[%s192 + $0x90] sm:$0xff]
      %v1167 = vld [vmem:[%s192 + $0x98] sm:$0xff]
      %v1168 = vld [vmem:[%s192 + $0xa0] sm:$0xff]
      %v1169 = vld [vmem:[%s192 + $0xa8] sm:$0xff]
      %v1170 = vld [vmem:[%s192 + $0xb0] sm:$0xff]
      %v1171 = vld [vmem:[%s192 + $0xb8] sm:$0xff]
      %v1172 = vld [vmem:[%s192 + $0xc0] sm:$0xff]
      %v1173 = vld [vmem:[%s192 + $0xc8] sm:$0xff]
      %v1174 = vld [vmem:[%s192 + $0xd0] sm:$0xff]
      %v1175 = vld [vmem:[%s192 + $0xd8] sm:$0xff]
      %v1176 = vld [vmem:[%s192 + $0xe0] sm:$0xff]
      %v1177 = vld [vmem:[%s192 + $0xe8] sm:$0xff]
      %v1178 = vmul.f32 %v1148, %v1118
      %v1179 = vmul.f32 %v1149, %v1119
      %v1180 = vmul.f32 %v1150, %v1120
      %v1181 = vmul.f32 %v1151, %v1121
      %v1182 = vmul.f32 %v1152, %v1122
      %v1183 = vmul.f32 %v1153, %v1123
      %v1184 = vmul.f32 %v1154, %v1124
      %v1185 = vmul.f32 %v1155, %v1125
      %v1186 = vmul.f32 %v1156, %v1126
      %v1187 = vmul.f32 %v1157, %v1127
      %v1188 = vmul.f32 %v1158, %v1128
      %v1189 = vmul.f32 %v1159, %v1129
      %v1190 = vmul.f32 %v1160, %v1130
      %v1191 = vmul.f32 %v1161, %v1131
      %v1192 = vmul.f32 %v1162, %v1132
      %v1193 = vmul.f32 %v1163, %v1133
      %v1194 = vmul.f32 %v1164, %v1134
      %v1195 = vmul.f32 %v1165, %v1135
      %v1196 = vmul.f32 %v1166, %v1136
      %v1197 = vmul.f32 %v1167, %v1137
      %v1198 = vmul.f32 %v1168, %v1138
      %v1199 = vmul.f32 %v1169, %v1139
      %v1200 = vmul.f32 %v1170, %v1140
      %v1201 = vmul.f32 %v1171, %v1141
      %v1202 = vmul.f32 %v1172, %v1142
      %v1203 = vmul.f32 %v1173, %v1143
      %v1204 = vmul.f32 %v1174, %v1144
      %v1205 = vmul.f32 %v1175, %v1145
      %v1206 = vmul.f32 %v1176, %v1146
      %v1207 = vmul.f32 %v1177, %v1147
      %v1208 = vmul.f32 %v938, %v1178
      %v1209 = vmul.f32 %v939, %v1179
      %v1210 = vmul.f32 %v940, %v1180
      %v1211 = vmul.f32 %v941, %v1181
      %v1212 = vmul.f32 %v942, %v1182
      %v1213 = vmul.f32 %v943, %v1183
      %v1214 = vmul.f32 %v944, %v1184
      %v1215 = vmul.f32 %v945, %v1185
      %v1216 = vmul.f32 %v946, %v1186
      %v1217 = vmul.f32 %v947, %v1187
      %v1218 = vmul.f32 %v948, %v1188
      %v1219 = vmul.f32 %v949, %v1189
      %v1220 = vmul.f32 %v950, %v1190
      %v1221 = vmul.f32 %v951, %v1191
      %v1222 = vmul.f32 %v952, %v1192
      %v1223 = vmul.f32 %v953, %v1193
      %v1224 = vmul.f32 %v954, %v1194
      %v1225 = vmul.f32 %v955, %v1195
      %v1226 = vmul.f32 %v956, %v1196
      %v1227 = vmul.f32 %v957, %v1197
      %v1228 = vmul.f32 %v958, %v1198
      %v1229 = vmul.f32 %v959, %v1199
      %v1230 = vmul.f32 %v960, %v1200
      %v1231 = vmul.f32 %v961, %v1201
      %v1232 = vmul.f32 %v962, %v1202
      %v1233 = vmul.f32 %v963, %v1203
      %v1234 = vmul.f32 %v964, %v1204
      %v1235 = vmul.f32 %v965, %v1205
      %v1236 = vmul.f32 %v966, %v1206
      %v1237 = vmul.f32 %v967, %v1207
      %1268 = vrot.lane.b32.xlu0 %v1208, 1
      %v1269 = vpop.permute.xlu0 %1268
      %1270 = vrot.lane.b32.xlu0 %v1209, 1
      %v1271 = vpop.permute.xlu0 %1270
      %1272 = vrot.lane.b32.xlu0 %v1210, 1
      %v1273 = vpop.permute.xlu0 %1272
      %1274 = vrot.lane.b32.xlu0 %v1211, 1
      %v1275 = vpop.permute.xlu0 %1274
      %1276 = vrot.lane.b32.xlu0 %v1212, 1
      %v1277 = vpop.permute.xlu0 %1276
      %1278 = vrot.lane.b32.xlu0 %v1213, 1
      %v1279 = vpop.permute.xlu0 %1278
      %1280 = vrot.lane.b32.xlu0 %v1214, 1
      %v1281 = vpop.permute.xlu0 %1280
      %1282 = vrot.lane.b32.xlu0 %v1215, 1
      %v1283 = vpop.permute.xlu0 %1282
      %1284 = vrot.lane.b32.xlu0 %v1216, 1
      %v1285 = vpop.permute.xlu0 %1284
      %1286 = vrot.lane.b32.xlu0 %v1217, 1
      %v1287 = vpop.permute.xlu0 %1286
      %1288 = vrot.lane.b32.xlu0 %v1218, 1
      %v1289 = vpop.permute.xlu0 %1288
      %1290 = vrot.lane.b32.xlu0 %v1219, 1
      %v1291 = vpop.permute.xlu0 %1290
      %1292 = vrot.lane.b32.xlu0 %v1220, 1
      %v1293 = vpop.permute.xlu0 %1292
      %1294 = vrot.lane.b32.xlu0 %v1221, 1
      %v1295 = vpop.permute.xlu0 %1294
      %1296 = vrot.lane.b32.xlu0 %v1222, 1
      %v1297 = vpop.permute.xlu0 %1296
      %1298 = vrot.lane.b32.xlu0 %v1223, 1
      %v1299 = vpop.permute.xlu0 %1298
      %1300 = vrot.lane.b32.xlu0 %v1224, 1
      %v1301 = vpop.permute.xlu0 %1300
      %1302 = vrot.lane.b32.xlu0 %v1225, 1
      %v1303 = vpop.permute.xlu0 %1302
      %1304 = vrot.lane.b32.xlu0 %v1226, 1
      %v1305 = vpop.permute.xlu0 %1304
      %1306 = vrot.lane.b32.xlu0 %v1227, 1
      %v1307 = vpop.permute.xlu0 %1306
      %1308 = vrot.lane.b32.xlu0 %v1228, 1
      %v1309 = vpop.permute.xlu0 %1308
      %1310 = vrot.lane.b32.xlu0 %v1229, 1
      %v1311 = vpop.permute.xlu0 %1310
      %1312 = vrot.lane.b32.xlu0 %v1230, 1
      %v1313 = vpop.permute.xlu0 %1312
      %1314 = vrot.lane.b32.xlu0 %v1231, 1
      %v1315 = vpop.permute.xlu0 %1314
      %1316 = vrot.lane.b32.xlu0 %v1232, 1
      %v1317 = vpop.permute.xlu0 %1316
      %1318 = vrot.lane.b32.xlu0 %v1233, 1
      %v1319 = vpop.permute.xlu0 %1318
      %1320 = vrot.lane.b32.xlu0 %v1234, 1
      %v1321 = vpop.permute.xlu0 %1320
      %1322 = vrot.lane.b32.xlu0 %v1235, 1
      %v1323 = vpop.permute.xlu0 %1322
      %1324 = vrot.lane.b32.xlu0 %v1236, 1
      %v1325 = vpop.permute.xlu0 %1324
      %1326 = vrot.lane.b32.xlu0 %v1237, 1
      %v1327 = vpop.permute.xlu0 %1326
      %v1358 = vsub.f32 %v1148, %v1269
      %v1359 = vsub.f32 %v1149, %v1271
      %v1360 = vsub.f32 %v1150, %v1273
      %v1361 = vsub.f32 %v1151, %v1275
      %v1362 = vsub.f32 %v1152, %v1277
      %v1363 = vsub.f32 %v1153, %v1279
      %v1364 = vsub.f32 %v1154, %v1281
      %v1365 = vsub.f32 %v1155, %v1283
      %v1366 = vsub.f32 %v1156, %v1285
      %v1367 = vsub.f32 %v1157, %v1287
      %v1368 = vsub.f32 %v1158, %v1289
      %v1369 = vsub.f32 %v1159, %v1291
      %v1370 = vsub.f32 %v1160, %v1293
      %v1371 = vsub.f32 %v1161, %v1295
      %v1372 = vsub.f32 %v1162, %v1297
      %v1373 = vsub.f32 %v1163, %v1299
      %v1374 = vsub.f32 %v1164, %v1301
      %v1375 = vsub.f32 %v1165, %v1303
      %v1376 = vsub.f32 %v1166, %v1305
      %v1377 = vsub.f32 %v1167, %v1307
      %v1378 = vsub.f32 %v1168, %v1309
      %v1379 = vsub.f32 %v1169, %v1311
      %v1380 = vsub.f32 %v1170, %v1313
      %v1381 = vsub.f32 %v1171, %v1315
      %v1382 = vsub.f32 %v1172, %v1317
      %v1383 = vsub.f32 %v1173, %v1319
      %v1384 = vsub.f32 %v1174, %v1321
      %v1385 = vsub.f32 %v1175, %v1323
      %v1386 = vsub.f32 %v1176, %v1325
      %v1387 = vsub.f32 %v1177, %v1327
      %1389 = vset.pattern.permute.xlu0 0
      %1390 = vperm.xlu0 %1389, %v1178
      %v1391 = vpop.permute.xlu0 %1390
      %1394 = vset.pattern.permute.xlu0 0
      %1395 = vperm.xlu0 %1394, %v1179
      %v1396 = vpop.permute.xlu0 %1395
      %1399 = vset.pattern.permute.xlu0 0
      %1400 = vperm.xlu0 %1399, %v1180
      %v1401 = vpop.permute.xlu0 %1400
      %1404 = vset.pattern.permute.xlu0 0
      %1405 = vperm.xlu0 %1404, %v1181
      %v1406 = vpop.permute.xlu0 %1405
      %1409 = vset.pattern.permute.xlu0 0
      %1410 = vperm.xlu0 %1409, %v1182
      %v1411 = vpop.permute.xlu0 %1410
      %1414 = vset.pattern.permute.xlu0 0
      %1415 = vperm.xlu0 %1414, %v1183
      %v1416 = vpop.permute.xlu0 %1415
      %1419 = vset.pattern.permute.xlu0 0
      %1420 = vperm.xlu0 %1419, %v1184
      %v1421 = vpop.permute.xlu0 %1420
      %1424 = vset.pattern.permute.xlu0 0
      %1425 = vperm.xlu0 %1424, %v1185
      %v1426 = vpop.permute.xlu0 %1425
      %1429 = vset.pattern.permute.xlu0 0
      %1430 = vperm.xlu0 %1429, %v1186
      %v1431 = vpop.permute.xlu0 %1430
      %1434 = vset.pattern.permute.xlu0 0
      %1435 = vperm.xlu0 %1434, %v1187
      %v1436 = vpop.permute.xlu0 %1435
      %1439 = vset.pattern.permute.xlu0 0
      %1440 = vperm.xlu0 %1439, %v1188
      %v1441 = vpop.permute.xlu0 %1440
      %1444 = vset.pattern.permute.xlu0 0
      %1445 = vperm.xlu0 %1444, %v1189
      %v1446 = vpop.permute.xlu0 %1445
      %1449 = vset.pattern.permute.xlu0 0
      %1450 = vperm.xlu0 %1449, %v1190
      %v1451 = vpop.permute.xlu0 %1450
      %1454 = vset.pattern.permute.xlu0 0
      %1455 = vperm.xlu0 %1454, %v1191
      %v1456 = vpop.permute.xlu0 %1455
      %1459 = vset.pattern.permute.xlu0 0
      %1460 = vperm.xlu0 %1459, %v1192
      %v1461 = vpop.permute.xlu0 %1460
      %1464 = vset.pattern.permute.xlu0 0
      %1465 = vperm.xlu0 %1464, %v1193
      %v1466 = vpop.permute.xlu0 %1465
      %1469 = vset.pattern.permute.xlu0 0
      %1470 = vperm.xlu0 %1469, %v1194
      %v1471 = vpop.permute.xlu0 %1470
      %1474 = vset.pattern.permute.xlu0 0
      %1475 = vperm.xlu0 %1474, %v1195
      %v1476 = vpop.permute.xlu0 %1475
      %1479 = vset.pattern.permute.xlu0 0
      %1480 = vperm.xlu0 %1479, %v1196
      %v1481 = vpop.permute.xlu0 %1480
      %1484 = vset.pattern.permute.xlu0 0
      %1485 = vperm.xlu0 %1484, %v1197
      %v1486 = vpop.permute.xlu0 %1485
      %1489 = vset.pattern.permute.xlu0 0
      %1490 = vperm.xlu0 %1489, %v1198
      %v1491 = vpop.permute.xlu0 %1490
      %1494 = vset.pattern.permute.xlu0 0
      %1495 = vperm.xlu0 %1494, %v1199
      %v1496 = vpop.permute.xlu0 %1495
      %1499 = vset.pattern.permute.xlu0 0
      %1500 = vperm.xlu0 %1499, %v1200
      %v1501 = vpop.permute.xlu0 %1500
      %1504 = vset.pattern.permute.xlu0 0
      %1505 = vperm.xlu0 %1504, %v1201
      %v1506 = vpop.permute.xlu0 %1505
      %1509 = vset.pattern.permute.xlu0 0
      %1510 = vperm.xlu0 %1509, %v1202
      %v1511 = vpop.permute.xlu0 %1510
      %1514 = vset.pattern.permute.xlu0 0
      %1515 = vperm.xlu0 %1514, %v1203
      %v1516 = vpop.permute.xlu0 %1515
      %1519 = vset.pattern.permute.xlu0 0
      %1520 = vperm.xlu0 %1519, %v1204
      %v1521 = vpop.permute.xlu0 %1520
      %1524 = vset.pattern.permute.xlu0 0
      %1525 = vperm.xlu0 %1524, %v1205
      %v1526 = vpop.permute.xlu0 %1525
      %1529 = vset.pattern.permute.xlu0 0
      %1530 = vperm.xlu0 %1529, %v1206
      %v1531 = vpop.permute.xlu0 %1530
      %1534 = vset.pattern.permute.xlu0 0
      %1535 = vperm.xlu0 %1534, %v1207
      %v1536 = vpop.permute.xlu0 %1535
      %v1538 = vmul.f32 %v459, %v1391
      %v1539 = vmul.f32 %v461, %v1391
      %v1540 = vmul.f32 %v465, %v1396
      %v1541 = vmul.f32 %v467, %v1396
      %v1542 = vmul.f32 %v471, %v1401
      %v1543 = vmul.f32 %v473, %v1401
      %v1544 = vmul.f32 %v477, %v1406
      %v1545 = vmul.f32 %v479, %v1406
      %v1546 = vmul.f32 %v483, %v1411
      %v1547 = vmul.f32 %v485, %v1411
      %v1548 = vmul.f32 %v489, %v1416
      %v1549 = vmul.f32 %v491, %v1416
      %v1550 = vmul.f32 %v495, %v1421
      %v1551 = vmul.f32 %v497, %v1421
      %v1552 = vmul.f32 %v501, %v1426
      %v1553 = vmul.f32 %v503, %v1426
      %v1554 = vmul.f32 %v507, %v1431
      %v1555 = vmul.f32 %v509, %v1431
      %v1556 = vmul.f32 %v513, %v1436
      %v1557 = vmul.f32 %v515, %v1436
      %v1558 = vmul.f32 %v519, %v1441
      %v1559 = vmul.f32 %v521, %v1441
      %v1560 = vmul.f32 %v525, %v1446
      %v1561 = vmul.f32 %v527, %v1446
      %v1562 = vmul.f32 %v531, %v1451
      %v1563 = vmul.f32 %v533, %v1451
      %v1564 = vmul.f32 %v537, %v1456
      %v1565 = vmul.f32 %v539, %v1456
      %v1566 = vmul.f32 %v543, %v1461
      %v1567 = vmul.f32 %v545, %v1461
      %v1568 = vmul.f32 %v549, %v1466
      %v1569 = vmul.f32 %v551, %v1466
      %v1570 = vmul.f32 %v555, %v1471
      %v1571 = vmul.f32 %v557, %v1471
      %v1572 = vmul.f32 %v561, %v1476
      %v1573 = vmul.f32 %v563, %v1476
      %v1574 = vmul.f32 %v567, %v1481
      %v1575 = vmul.f32 %v569, %v1481
      %v1576 = vmul.f32 %v573, %v1486
      %v1577 = vmul.f32 %v575, %v1486
      %v1578 = vmul.f32 %v579, %v1491
      %v1579 = vmul.f32 %v581, %v1491
      %v1580 = vmul.f32 %v585, %v1496
      %v1581 = vmul.f32 %v587, %v1496
      %v1582 = vmul.f32 %v591, %v1501
      %v1583 = vmul.f32 %v593, %v1501
      %v1584 = vmul.f32 %v597, %v1506
      %v1585 = vmul.f32 %v599, %v1506
      %v1586 = vmul.f32 %v603, %v1511
      %v1587 = vmul.f32 %v605, %v1511
      %v1588 = vmul.f32 %v609, %v1516
      %v1589 = vmul.f32 %v611, %v1516
      %v1590 = vmul.f32 %v615, %v1521
      %v1591 = vmul.f32 %v617, %v1521
      %v1592 = vmul.f32 %v621, %v1526
      %v1593 = vmul.f32 %v623, %v1526
      %v1594 = vmul.f32 %v627, %v1531
      %v1595 = vmul.f32 %v629, %v1531
      %v1596 = vmul.f32 %v633, %v1536
      %v1597 = vmul.f32 %v635, %v1536
      %1599 = vset.pattern.permute.xlu0 1
      %1600 = vperm.xlu0 %1599, %v1358
      %v1601 = vpop.permute.xlu0 %1600
      %1604 = vset.pattern.permute.xlu0 1
      %1605 = vperm.xlu0 %1604, %v1359
      %v1606 = vpop.permute.xlu0 %1605
      %1609 = vset.pattern.permute.xlu0 1
      %1610 = vperm.xlu0 %1609, %v1360
      %v1611 = vpop.permute.xlu0 %1610
      %1614 = vset.pattern.permute.xlu0 1
      %1615 = vperm.xlu0 %1614, %v1361
      %v1616 = vpop.permute.xlu0 %1615
      %1619 = vset.pattern.permute.xlu0 1
      %1620 = vperm.xlu0 %1619, %v1362
      %v1621 = vpop.permute.xlu0 %1620
      %1624 = vset.pattern.permute.xlu0 1
      %1625 = vperm.xlu0 %1624, %v1363
      %v1626 = vpop.permute.xlu0 %1625
      %1629 = vset.pattern.permute.xlu0 1
      %1630 = vperm.xlu0 %1629, %v1364
      %v1631 = vpop.permute.xlu0 %1630
      %1634 = vset.pattern.permute.xlu0 1
      %1635 = vperm.xlu0 %1634, %v1365
      %v1636 = vpop.permute.xlu0 %1635
      %1639 = vset.pattern.permute.xlu0 1
      %1640 = vperm.xlu0 %1639, %v1366
      %v1641 = vpop.permute.xlu0 %1640
      %1644 = vset.pattern.permute.xlu0 1
      %1645 = vperm.xlu0 %1644, %v1367
      %v1646 = vpop.permute.xlu0 %1645
      %1649 = vset.pattern.permute.xlu0 1
      %1650 = vperm.xlu0 %1649, %v1368
      %v1651 = vpop.permute.xlu0 %1650
      %1654 = vset.pattern.permute.xlu0 1
      %1655 = vperm.xlu0 %1654, %v1369
      %v1656 = vpop.permute.xlu0 %1655
      %1659 = vset.pattern.permute.xlu0 1
      %1660 = vperm.xlu0 %1659, %v1370
      %v1661 = vpop.permute.xlu0 %1660
      %1664 = vset.pattern.permute.xlu0 1
      %1665 = vperm.xlu0 %1664, %v1371
      %v1666 = vpop.permute.xlu0 %1665
      %1669 = vset.pattern.permute.xlu0 1
      %1670 = vperm.xlu0 %1669, %v1372
      %v1671 = vpop.permute.xlu0 %1670
      %1674 = vset.pattern.permute.xlu0 1
      %1675 = vperm.xlu0 %1674, %v1373
      %v1676 = vpop.permute.xlu0 %1675
      %1679 = vset.pattern.permute.xlu0 1
      %1680 = vperm.xlu0 %1679, %v1374
      %v1681 = vpop.permute.xlu0 %1680
      %1684 = vset.pattern.permute.xlu0 1
      %1685 = vperm.xlu0 %1684, %v1375
      %v1686 = vpop.permute.xlu0 %1685
      %1689 = vset.pattern.permute.xlu0 1
      %1690 = vperm.xlu0 %1689, %v1376
      %v1691 = vpop.permute.xlu0 %1690
      %1694 = vset.pattern.permute.xlu0 1
      %1695 = vperm.xlu0 %1694, %v1377
      %v1696 = vpop.permute.xlu0 %1695
      %1699 = vset.pattern.permute.xlu0 1
      %1700 = vperm.xlu0 %1699, %v1378
      %v1701 = vpop.permute.xlu0 %1700
      %1704 = vset.pattern.permute.xlu0 1
      %1705 = vperm.xlu0 %1704, %v1379
      %v1706 = vpop.permute.xlu0 %1705
      %1709 = vset.pattern.permute.xlu0 1
      %1710 = vperm.xlu0 %1709, %v1380
      %v1711 = vpop.permute.xlu0 %1710
      %1714 = vset.pattern.permute.xlu0 1
      %1715 = vperm.xlu0 %1714, %v1381
      %v1716 = vpop.permute.xlu0 %1715
      %1719 = vset.pattern.permute.xlu0 1
      %1720 = vperm.xlu0 %1719, %v1382
      %v1721 = vpop.permute.xlu0 %1720
      %1724 = vset.pattern.permute.xlu0 1
      %1725 = vperm.xlu0 %1724, %v1383
      %v1726 = vpop.permute.xlu0 %1725
      %1729 = vset.pattern.permute.xlu0 1
      %1730 = vperm.xlu0 %1729, %v1384
      %v1731 = vpop.permute.xlu0 %1730
      %1734 = vset.pattern.permute.xlu0 1
      %1735 = vperm.xlu0 %1734, %v1385
      %v1736 = vpop.permute.xlu0 %1735
      %1739 = vset.pattern.permute.xlu0 1
      %1740 = vperm.xlu0 %1739, %v1386
      %v1741 = vpop.permute.xlu0 %1740
      %1744 = vset.pattern.permute.xlu0 1
      %1745 = vperm.xlu0 %1744, %v1387
      %v1746 = vpop.permute.xlu0 %1745
      %v1748 = vadd.f32 %v1538, %v1601
      %v1749 = vadd.f32 %v1539, %v1601
      %v1750 = vadd.f32 %v1540, %v1606
      %v1751 = vadd.f32 %v1541, %v1606
      %v1752 = vadd.f32 %v1542, %v1611
      %v1753 = vadd.f32 %v1543, %v1611
      %v1754 = vadd.f32 %v1544, %v1616
      %v1755 = vadd.f32 %v1545, %v1616
      %v1756 = vadd.f32 %v1546, %v1621
      %v1757 = vadd.f32 %v1547, %v1621
      %v1758 = vadd.f32 %v1548, %v1626
      %v1759 = vadd.f32 %v1549, %v1626
      %v1760 = vadd.f32 %v1550, %v1631
      %v1761 = vadd.f32 %v1551, %v1631
      %v1762 = vadd.f32 %v1552, %v1636
      %v1763 = vadd.f32 %v1553, %v1636
      %v1764 = vadd.f32 %v1554, %v1641
      %v1765 = vadd.f32 %v1555, %v1641
      %v1766 = vadd.f32 %v1556, %v1646
      %v1767 = vadd.f32 %v1557, %v1646
      %v1768 = vadd.f32 %v1558, %v1651
      %v1769 = vadd.f32 %v1559, %v1651
      %v1770 = vadd.f32 %v1560, %v1656
      %v1771 = vadd.f32 %v1561, %v1656
      %v1772 = vadd.f32 %v1562, %v1661
      %v1773 = vadd.f32 %v1563, %v1661
      %v1774 = vadd.f32 %v1564, %v1666
      %v1775 = vadd.f32 %v1565, %v1666
      %v1776 = vadd.f32 %v1566, %v1671
      %v1777 = vadd.f32 %v1567, %v1671
      %v1778 = vadd.f32 %v1568, %v1676
      %v1779 = vadd.f32 %v1569, %v1676
      %v1780 = vadd.f32 %v1570, %v1681
      %v1781 = vadd.f32 %v1571, %v1681
      %v1782 = vadd.f32 %v1572, %v1686
      %v1783 = vadd.f32 %v1573, %v1686
      %v1784 = vadd.f32 %v1574, %v1691
      %v1785 = vadd.f32 %v1575, %v1691
      %v1786 = vadd.f32 %v1576, %v1696
      %v1787 = vadd.f32 %v1577, %v1696
      %v1788 = vadd.f32 %v1578, %v1701
      %v1789 = vadd.f32 %v1579, %v1701
      %v1790 = vadd.f32 %v1580, %v1706
      %v1791 = vadd.f32 %v1581, %v1706
      %v1792 = vadd.f32 %v1582, %v1711
      %v1793 = vadd.f32 %v1583, %v1711
      %v1794 = vadd.f32 %v1584, %v1716
      %v1795 = vadd.f32 %v1585, %v1716
      %v1796 = vadd.f32 %v1586, %v1721
      %v1797 = vadd.f32 %v1587, %v1721
      %v1798 = vadd.f32 %v1588, %v1726
      %v1799 = vadd.f32 %v1589, %v1726
      %v1800 = vadd.f32 %v1590, %v1731
      %v1801 = vadd.f32 %v1591, %v1731
      %v1802 = vadd.f32 %v1592, %v1736
      %v1803 = vadd.f32 %v1593, %v1736
      %v1804 = vadd.f32 %v1594, %v1741
      %v1805 = vadd.f32 %v1595, %v1741
      %v1806 = vadd.f32 %v1596, %v1746
      %v1807 = vadd.f32 %v1597, %v1746
      %1808 = vst [vmem:[%s199] sm:$0xff] %v1748
      %1809 = vst.msk [vmem:[%s199 + $0x8] sm:$0xff] %vm637, %v1749
      %1810 = vst [vmem:[%s199 + $0x10] sm:$0xff] %v1750
      %1811 = vst.msk [vmem:[%s199 + $0x18] sm:$0xff] %vm637, %v1751
      %1812 = vst [vmem:[%s199 + $0x20] sm:$0xff] %v1752
      %1813 = vst.msk [vmem:[%s199 + $0x28] sm:$0xff] %vm637, %v1753
      %1814 = vst [vmem:[%s199 + $0x30] sm:$0xff] %v1754
      %1815 = vst.msk [vmem:[%s199 + $0x38] sm:$0xff] %vm637, %v1755
      %1816 = vst [vmem:[%s199 + $0x40] sm:$0xff] %v1756
      %1817 = vst.msk [vmem:[%s199 + $0x48] sm:$0xff] %vm637, %v1757
      %1818 = vst [vmem:[%s199 + $0x50] sm:$0xff] %v1758
      %1819 = vst.msk [vmem:[%s199 + $0x58] sm:$0xff] %vm637, %v1759
      %1820 = vst [vmem:[%s199 + $0x60] sm:$0xff] %v1760
      %1821 = vst.msk [vmem:[%s199 + $0x68] sm:$0xff] %vm637, %v1761
      %1822 = vst [vmem:[%s199 + $0x70] sm:$0xff] %v1762
      %1823 = vst.msk [vmem:[%s199 + $0x78] sm:$0xff] %vm637, %v1763
      %1824 = vst [vmem:[%s199 + $0x80] sm:$0xff] %v1764
      %1825 = vst.msk [vmem:[%s199 + $0x88] sm:$0xff] %vm637, %v1765
      %1826 = vst [vmem:[%s199 + $0x90] sm:$0xff] %v1766
      %1827 = vst.msk [vmem:[%s199 + $0x98] sm:$0xff] %vm637, %v1767
      %1828 = vst [vmem:[%s199 + $0xa0] sm:$0xff] %v1768
      %1829 = vst.msk [vmem:[%s199 + $0xa8] sm:$0xff] %vm637, %v1769
      %1830 = vst [vmem:[%s199 + $0xb0] sm:$0xff] %v1770
      %1831 = vst.msk [vmem:[%s199 + $0xb8] sm:$0xff] %vm637, %v1771
      %1832 = vst [vmem:[%s199 + $0xc0] sm:$0xff] %v1772
      %1833 = vst.msk [vmem:[%s199 + $0xc8] sm:$0xff] %vm637, %v1773
      %1834 = vst [vmem:[%s199 + $0xd0] sm:$0xff] %v1774
      %1835 = vst.msk [vmem:[%s199 + $0xd8] sm:$0xff] %vm637, %v1775
      %1836 = vst [vmem:[%s199 + $0xe0] sm:$0xff] %v1776
      %1837 = vst.msk [vmem:[%s199 + $0xe8] sm:$0xff] %vm637, %v1777
      %1838 = vst [vmem:[%s199 + $0xf0] sm:$0xff] %v1778
      %1839 = vst.msk [vmem:[%s199 + $0xf8] sm:$0xff] %vm637, %v1779
      %1840 = vst [vmem:[%s199 + $0x100] sm:$0xff] %v1780
      %1841 = vst.msk [vmem:[%s199 + $0x108] sm:$0xff] %vm637, %v1781
      %1842 = vst [vmem:[%s199 + $0x110] sm:$0xff] %v1782
      %1843 = vst.msk [vmem:[%s199 + $0x118] sm:$0xff] %vm637, %v1783
      %1844 = vst [vmem:[%s199 + $0x120] sm:$0xff] %v1784
      %1845 = vst.msk [vmem:[%s199 + $0x128] sm:$0xff] %vm637, %v1785
      %1846 = vst [vmem:[%s199 + $0x130] sm:$0xff] %v1786
      %1847 = vst.msk [vmem:[%s199 + $0x138] sm:$0xff] %vm637, %v1787
      %1848 = vst [vmem:[%s199 + $0x140] sm:$0xff] %v1788
      %1849 = vst.msk [vmem:[%s199 + $0x148] sm:$0xff] %vm637, %v1789
      %1850 = vst [vmem:[%s199 + $0x150] sm:$0xff] %v1790
      %1851 = vst.msk [vmem:[%s199 + $0x158] sm:$0xff] %vm637, %v1791
      %1852 = vst [vmem:[%s199 + $0x160] sm:$0xff] %v1792
      %1853 = vst.msk [vmem:[%s199 + $0x168] sm:$0xff] %vm637, %v1793
      %1854 = vst [vmem:[%s199 + $0x170] sm:$0xff] %v1794
      %1855 = vst.msk [vmem:[%s199 + $0x178] sm:$0xff] %vm637, %v1795
      %1856 = vst [vmem:[%s199 + $0x180] sm:$0xff] %v1796
      %1857 = vst.msk [vmem:[%s199 + $0x188] sm:$0xff] %vm637, %v1797
      %1858 = vst [vmem:[%s199 + $0x190] sm:$0xff] %v1798
      %1859 = vst.msk [vmem:[%s199 + $0x198] sm:$0xff] %vm637, %v1799
      %1860 = vst [vmem:[%s199 + $0x1a0] sm:$0xff] %v1800
      %1861 = vst.msk [vmem:[%s199 + $0x1a8] sm:$0xff] %vm637, %v1801
      %1862 = vst [vmem:[%s199 + $0x1b0] sm:$0xff] %v1802
      %1863 = vst.msk [vmem:[%s199 + $0x1b8] sm:$0xff] %vm637, %v1803
      %1864 = vst [vmem:[%s199 + $0x1c0] sm:$0xff] %v1804
      %1865 = vst.msk [vmem:[%s199 + $0x1c8] sm:$0xff] %vm637, %v1805
      %1866 = vst [vmem:[%s199 + $0x1d0] sm:$0xff] %v1806
      %1867 = vst.msk [vmem:[%s199 + $0x1d8] sm:$0xff] %vm637, %v1807
      %s1868 = smul.u32 30, %s14
      %p1869 = scmp.lt.s32.totalorder %s1868, 119
      %s1870 = scalar_select %p1869, %s1868, 119
      %s1871 = smul.addr %s1870, 2
      %s1872 = smul.addr %s1871, 8
      %s1873 = scalar_lea.vmem %s3, %s1872
      // Predicated region
      $region33: #{tpu_custom_call.1} parent=31 // pred_check
        %p1874 = pneg %p105
      $region34: #{tpu_custom_call.1} parent=31 // pred_check_branch
        %1876 = sbr.rel (%p1874) target = $region36
      $region35: #{tpu_custom_call.1} parent=31 // pred_region
        %s1877 = smul.u32 30, %s14
      $region36: #{tpu_custom_call.1} parent=31 // pred_fallthru
        _
    $region32: #{tpu_custom_call.1} parent=5 // pred_fallthru
      _
    %p1878 = scmp.le.s32.totalorder 2, %s9
    // Predicated region
    $region37: #{tpu_custom_call.1} parent=5 // pred_check
      %p1879 = pneg %p1878
    $region38: #{tpu_custom_call.1} parent=5 // pred_check_branch
      %1881 = sbr.rel (%p1879) target = $region40
    $region39: #{tpu_custom_call.1} parent=5 // pred_region
      %s1882 = ssub.s32 %s9, 2
      // Predicated region
      $region41: #{tpu_custom_call.1} parent=39 // pred_check
        %p1883 = pneg %p111
      $region42: #{tpu_custom_call.1} parent=39 // pred_check_branch
        %1885 = sbr.rel (%p1883) target = $region44
      $region43: #{tpu_custom_call.1} parent=39 // pred_region
        %s1886 = smul.u32 30, %s15
        %p1887 = scmp.lt.s32.totalorder %s1886, 119
        %s1888 = scalar_select %p1887, %s1886, 119
        %s1889 = smul.addr %s1888, 2
        %s1890 = smul.addr %s1889, 8
        %s1891 = scalar_lea.vmem %s3, %s1890
      $region44: #{tpu_custom_call.1} parent=39 // pred_fallthru
        _
    $region40: #{tpu_custom_call.1} parent=5 // pred_fallthru
      _
  $region6: #{tpu_custom_call.1} parent=0 // loop_footer
    %s13 = sadd.s32 1, %s9
  $region7: #{tpu_custom_call.1} parent=0 // loop_footer_branch
    %8 = sbr.rel target = $region3
  $region8: #{tpu_custom_call.1} parent=0 // loop_exit
    _

</llo_original>
